<compile_context>
chip_gen: v7x
topology: tpu7x:2x2x1
jax: 0.10.0
libtpu: 0.0.40
codegen_flags: <defaults>
</compile_context>

<pallas_src>
import functools

import jax
import jax.numpy as jnp
from jax.experimental import pallas as pl
from jax.experimental.pallas import tpu as pltpu


# ----------------------------------------------------------------------------
# Fused kernel: [conv3x3 + IN + ReLU] -> in-VMEM reflect pad -> [conv3x3 + IN]
# -> residual add, all on the padded (Hp*Wp)-strided flat plane.
# ----------------------------------------------------------------------------
def _residual_block_kernel(xpad_ref, row_ref, col_ref, w1_ref, w2_ref,
                           g1_ref, bt1_ref, g2_ref, bt2_ref, out_ref,
                           *, K, H, W, Hp, Wp, Lr, eps, mxu_dtype):
    cout = out_ref.shape[0]
    inv_hw = 1.0 / (H * W)

    xpad = xpad_ref[...]                               # (Cin, Lr) f32, padded plane
    row = jnp.broadcast_to(row_ref[...], (cout, Lr))   # flat-lane // Wp
    col = jnp.broadcast_to(col_ref[...], (cout, Lr))   # flat-lane %  Wp
    valid = (row < H) & (col < W)                      # conv-output positions

    def shifted(v, d):
        """result[p] = v[(p + d) % Lr]; wrap only lands on discarded lanes."""
        d = d % Lr
        if d == 0:
            return v
        return jnp.roll(v, -d, axis=1)

    def conv3x3(x_flat, w_ref):
        # Stack the 9 tap-shifted slabs along the contraction dim and do ONE
        # (Cout, K*K*Cin) @ (K*K*Cin, Lr) MXU dot with f32 accumulation.
        slabs = [shifted(x_flat, ki * Wp + kj)
                 for ki in range(K) for kj in range(K)]
        xmat = jnp.concatenate(slabs, axis=0).astype(mxu_dtype)
        return jnp.dot(w_ref[...], xmat, preferred_element_type=jnp.float32)

    def instance_norm(y, g_ref, bt_ref):
        # One-pass per-channel stats over the H*W valid lanes; affine folded
        # into a single FMA.  Conv bias is dropped upstream because the mean
        # subtraction cancels it exactly.
        ym = jnp.where(valid, y, 0.0)
        s1 = jnp.sum(ym, axis=1, keepdims=True)
        s2 = jnp.sum(ym * ym, axis=1, keepdims=True)
        mean = s1 * inv_hw
        var = jnp.maximum(s2 * inv_hw - mean * mean, 0.0)
        scale = g_ref[...] * jax.lax.rsqrt(var + eps)
        shift = bt_ref[...] - mean * scale
        return y * scale + shift

    def reflect_pad(y):
        # y holds valid data at rows [0,H) x cols [0,W) of the (Hp,Wp)-strided
        # plane; rebuild the full reflect-padded plane entirely in VMEM.
        base = shifted(y, -(Wp + 1))                              # interior: y[r-1, c-1]
        yp = jnp.where(row == 0, shifted(base, 2 * Wp), base)     # row 0   <- row 2
        yp = jnp.where(row == Hp - 1, shifted(base, -2 * Wp), yp) # row -1  <- row -3
        yp = jnp.where(col == 0, shifted(yp, 2), yp)              # col 0   <- col 2
        yp = jnp.where(col == Wp - 1, shifted(yp, -2), yp)        # col -1  <- col -3
        return yp

    # --- ConvBlock 1: conv3x3 + InstanceNorm + ReLU ---------------------------
    y1 = conv3x3(xpad, w1_ref)
    y1 = jnp.maximum(instance_norm(y1, g1_ref, bt1_ref), 0.0)

    # --- reflection pad of the intermediate (stays in VMEM) -------------------
    y1p = reflect_pad(y1)

    # --- ConvBlock 2: conv3x3 + InstanceNorm (no ReLU) ------------------------
    y2 = conv3x3(y1p, w2_ref)
    y2 = instance_norm(y2, g2_ref, bt2_ref)

    # --- residual add: x sits at rows/cols [1,H+1) x [1,W+1) of the plane -----
    out = shifted(xpad, Wp + 1) + y2

    out_ref[...] = out[:, : H * Wp].astype(out_ref.dtype)


# ----------------------------------------------------------------------------
# Wrapper: pad/flatten once, stack weights for the folded contraction, run the
# fused kernel over the batch grid, drop the pad columns from the output.
# ----------------------------------------------------------------------------
def residual_block_forward(x, params, *, mxu_dtype=jnp.bfloat16, eps=1e-5):
    N, C, H, W = x.shape
    K = params["w1"].shape[-1]                      # 3
    rp = K // 2
    Hp, Wp = H + 2 * rp, W + 2 * rp
    L = Hp * Wp
    Lr = ((L + 127) // 128) * 128                   # lane-pad plane to a vreg multiple
    HWp = H * Wp

    # ReflectionPad2d(1) once (XLA), flatten to the padded plane, lane-pad tail.
    # x stays f32 in HBM so the residual add is exact; dot operands are cast to
    # bf16 inside the kernel.
    xpad = jnp.pad(x.astype(jnp.float32),
                   ((0, 0), (0, 0), (rp, rp), (rp, rp)),
                   mode="reflect").reshape(N, C, L)
    xpad = jnp.pad(xpad, ((0, 0), (0, 0), (0, Lr - L)))

    # Row / column ids of every flat lane (tiny; avoids in-kernel int div/mod).
    lane = jnp.arange(Lr, dtype=jnp.int32)
    row_ids = (lane // Wp).reshape(1, Lr)
    col_ids = (lane % Wp).reshape(1, Lr)

    def stack_weights(w):
        cout, cin = w.shape[:2]
        # Wmat[o, (ki*K + kj)*Cin + ci] = w[o, ci, ki, kj]  (matches slab order)
        return (jnp.transpose(w, (2, 3, 1, 0))
                .reshape(K * K * cin, cout).T.astype(mxu_dtype))

    w1m = stack_weights(params["w1"])
    w2m = stack_weights(params["w2"])
    g1 = params["g1"].reshape(C, 1).astype(jnp.float32)
    bt1 = params["beta1"].reshape(C, 1).astype(jnp.float32)
    g2 = params["g2"].reshape(C, 1).astype(jnp.float32)
    bt2 = params["beta2"].reshape(C, 1).astype(jnp.float32)
    # params["b1"] / params["b2"] are intentionally unused: with InstanceNorm
    # the conv bias is exactly cancelled by the mean subtraction.

    kern = functools.partial(
        _residual_block_kernel, K=K, H=H, W=W, Hp=Hp, Wp=Wp, Lr=Lr, eps=eps,
        mxu_dtype=mxu_dtype)

    const = lambda n: (0, 0)
    out = pl.pallas_call(
        kern,
        out_shape=jax.ShapeDtypeStruct((N, C, HWp), jnp.float32),
        grid_spec=pltpu.PrefetchScalarGridSpec(
            num_scalar_prefetch=0,
            grid=(N,),
            in_specs=[
                pl.BlockSpec((None, C, Lr), lambda n: (n, 0, 0)),   # padded x plane
                pl.BlockSpec((1, Lr), const),                       # row ids
                pl.BlockSpec((1, Lr), const),                       # col ids
                pl.BlockSpec((C, K * K * C), const),                # stacked w1
                pl.BlockSpec((C, K * K * C), const),                # stacked w2
                pl.BlockSpec((C, 1), const),                        # gamma1
                pl.BlockSpec((C, 1), const),                        # beta1
                pl.BlockSpec((C, 1), const),                        # gamma2
                pl.BlockSpec((C, 1), const),                        # beta2
            ],
            out_specs=pl.BlockSpec((None, C, HWp), lambda n: (n, 0, 0)),
        ),
        compiler_params=pltpu.CompilerParams(
            dimension_semantics=("parallel",)),
    )(xpad, row_ids, col_ids, w1m, w2m, g1, bt1, g2, bt2)

    # Rows [0,H) were written with the padded Wp stride; drop the pad columns.
    return out.reshape(N, C, H, Wp)[:, :, :, :W]


# ----------------------------------------------------------------------------
# Pure-JAX reference (for correctness check)
# ----------------------------------------------------------------------------
def _conv_block_reference(x, w, b, gamma, beta, *, enable_relu=True):
    K = w.shape[2]
    rp = K // 2
    xp = jnp.pad(x, ((0, 0), (0, 0), (rp, rp), (rp, rp)), mode="reflect")
    y = jax.lax.conv_general_dilated(
        xp, w, window_strides=(1, 1), padding=[(0, 0), (0, 0)],
        dimension_numbers=("NCHW", "OIHW", "NCHW"),
        precision=jax.lax.Precision.HIGHEST)
    y = y + b.reshape(1, -1, 1, 1)
    mean = jnp.mean(y, axis=(2, 3), keepdims=True)
    var = jnp.mean((y - mean) ** 2, axis=(2, 3), keepdims=True)
    y = (y - mean) * jax.lax.rsqrt(var + 1e-5)
    y = y * gamma.reshape(1, -1, 1, 1) + beta.reshape(1, -1, 1, 1)
    if enable_relu:
        y = jnp.maximum(y, 0.0)
    return y


def residual_block_reference(x, params):
    y = _conv_block_reference(x, params["w1"], params["b1"], params["g1"],
                              params["beta1"], enable_relu=True)
    y = _conv_block_reference(y, params["w2"], params["b2"], params["g2"],
                              params["beta2"], enable_relu=False)
    return x + y


if __name__ == "__main__":
    # Module config: ResidualBlock(channel=4), x: (N=2, C=4, H=16, W=16)
    N, C, H, W = 2, 4, 16, 16

    key = jax.random.PRNGKey(0)
    k1, k2, k3, k4, k5, k6, k7, k8, kx = jax.random.split(key, 9)
    params = {
        "w1": 0.1 * jax.random.normal(k1, (C, C, 3, 3), dtype=jnp.float32),
        "b1": 0.1 * jax.random.normal(k2, (C,), dtype=jnp.float32),
        "g1": 1.0 + 0.1 * jax.random.normal(k3, (C,), dtype=jnp.float32),
        "beta1": 0.1 * jax.random.normal(k4, (C,), dtype=jnp.float32),
        "w2": 0.1 * jax.random.normal(k5, (C, C, 3, 3), dtype=jnp.float32),
        "b2": 0.1 * jax.random.normal(k6, (C,), dtype=jnp.float32),
        "g2": 1.0 + 0.1 * jax.random.normal(k7, (C,), dtype=jnp.float32),
        "beta2": 0.1 * jax.random.normal(k8, (C,), dtype=jnp.float32),
    }
    x = jax.random.normal(kx, (N, C, H, W), dtype=jnp.float32)

    ref = residual_block_reference(x, params)

    # f32 MXU operands: checks the fused algorithm (taps / pad / IN / residual).
    fwd_f32 = jax.jit(functools.partial(residual_block_forward,
                                        mxu_dtype=jnp.float32))
    out_f32 = jax.block_until_ready(fwd_f32(x, params))
    assert out_f32.shape == (N, C, H, W)
    assert jnp.allclose(out_f32, ref, atol=5e-2, rtol=5e-2), "f32 mismatch"

    # bf16 MXU operands (recommended perf config): looser tolerance.
    fwd_bf16 = jax.jit(functools.partial(residual_block_forward,
                                         mxu_dtype=jnp.bfloat16))
    out_bf16 = jax.block_until_ready(fwd_bf16(x, params))
    assert out_bf16.shape == (N, C, H, W)
    assert jnp.allclose(out_bf16, ref, atol=5e-2, rtol=5e-2), "bf16 mismatch"

    print("KERNEL_OK")
</pallas_src>

<mosaic_0001>
module attributes {stable_mosaic.version = 11 : i64} {
  func.func @_residual_block_kernel(%arg0: i32, %arg1: memref<1x4x384xf32, #tpu.memory_space<vmem>>, %arg2: memref<1x384xi32, #tpu.memory_space<vmem>>, %arg3: memref<1x384xi32, #tpu.memory_space<vmem>>, %arg4: memref<4x36xf32, #tpu.memory_space<vmem>>, %arg5: memref<4x36xf32, #tpu.memory_space<vmem>>, %arg6: memref<4x1xf32, #tpu.memory_space<vmem>>, %arg7: memref<4x1xf32, #tpu.memory_space<vmem>>, %arg8: memref<4x1xf32, #tpu.memory_space<vmem>>, %arg9: memref<4x1xf32, #tpu.memory_space<vmem>>, %arg10: memref<1x4x288xf32, #tpu.memory_space<vmem>>) attributes {dimension_semantics = [#tpu.dimension_semantics<parallel>], iteration_bounds = array<i64: 2>, scalar_prefetch = 0 : i64, scratch_operands = 0 : i64, tpu.core_type = #tpu.core_type<tc>, window_params = [{transform_indices = @transform_0, window_bounds = array<i64: 1, 4, 384>}, {pipeline_mode = #tpu.pipeline_mode<synchronous>, transform_indices = @transform_1, window_bounds = array<i64: 1, 384>}, {pipeline_mode = #tpu.pipeline_mode<synchronous>, transform_indices = @transform_2, window_bounds = array<i64: 1, 384>}, {pipeline_mode = #tpu.pipeline_mode<synchronous>, transform_indices = @transform_3, window_bounds = array<i64: 4, 36>}, {pipeline_mode = #tpu.pipeline_mode<synchronous>, transform_indices = @transform_4, window_bounds = array<i64: 4, 36>}, {pipeline_mode = #tpu.pipeline_mode<synchronous>, transform_indices = @transform_5, window_bounds = array<i64: 4, 1>}, {pipeline_mode = #tpu.pipeline_mode<synchronous>, transform_indices = @transform_6, window_bounds = array<i64: 4, 1>}, {pipeline_mode = #tpu.pipeline_mode<synchronous>, transform_indices = @transform_7, window_bounds = array<i64: 4, 1>}, {pipeline_mode = #tpu.pipeline_mode<synchronous>, transform_indices = @transform_8, window_bounds = array<i64: 4, 1>}, {transform_indices = @transform_9, window_bounds = array<i64: 1, 4, 288>}]} {
    %c0 = arith.constant 0 : index
    %c0_0 = arith.constant 0 : index
    %c0_1 = arith.constant 0 : index
    %0 = vector.load %arg1[%c0, %c0_0, %c0_1] : memref<1x4x384xf32, #tpu.memory_space<vmem>>, vector<1x4x384xf32>
    %1 = vector.shape_cast %0 : vector<1x4x384xf32> to vector<4x384xf32>
    %c0_2 = arith.constant 0 : index
    %c0_3 = arith.constant 0 : index
    %2 = vector.load %arg2[%c0_2, %c0_3] : memref<1x384xi32, #tpu.memory_space<vmem>>, vector<1x384xi32>
    %3 = vector.shape_cast %2 : vector<1x384xi32> to vector<1x384xi32>
    %4 = vector.broadcast %3 : vector<1x384xi32> to vector<4x384xi32>
    %c0_4 = arith.constant 0 : index
    %c0_5 = arith.constant 0 : index
    %5 = vector.load %arg3[%c0_4, %c0_5] : memref<1x384xi32, #tpu.memory_space<vmem>>, vector<1x384xi32>
    %6 = vector.shape_cast %5 : vector<1x384xi32> to vector<1x384xi32>
    %7 = vector.broadcast %6 : vector<1x384xi32> to vector<4x384xi32>
    %c16_i32 = arith.constant 16 : i32
    %8 = vector.broadcast %c16_i32 : i32 to vector<4x384xi32>
    %9 = arith.cmpi slt, %4, %8 : vector<4x384xi32>
    %c16_i32_6 = arith.constant 16 : i32
    %10 = vector.broadcast %c16_i32_6 : i32 to vector<4x384xi32>
    %11 = arith.cmpi slt, %7, %10 : vector<4x384xi32>
    %12 = arith.andi %9, %11 : vector<4x384xi1>
    %13 = vector.extract_strided_slice %1 {offsets = [0, 1], sizes = [4, 383], strides = [1, 1]} : vector<4x384xf32> to vector<4x383xf32>
    %14 = vector.extract_strided_slice %1 {offsets = [0, 0], sizes = [4, 1], strides = [1, 1]} : vector<4x384xf32> to vector<4x1xf32>
    %15 = tpu.concatenate %13, %14 in 1 : vector<4x383xf32>, vector<4x1xf32> -> vector<4x384xf32>
    %16 = vector.extract_strided_slice %1 {offsets = [0, 2], sizes = [4, 382], strides = [1, 1]} : vector<4x384xf32> to vector<4x382xf32>
    %17 = vector.extract_strided_slice %1 {offsets = [0, 0], sizes = [4, 2], strides = [1, 1]} : vector<4x384xf32> to vector<4x2xf32>
    %18 = tpu.concatenate %16, %17 in 1 : vector<4x382xf32>, vector<4x2xf32> -> vector<4x384xf32>
    %19 = vector.extract_strided_slice %1 {offsets = [0, 18], sizes = [4, 366], strides = [1, 1]} : vector<4x384xf32> to vector<4x366xf32>
    %20 = vector.extract_strided_slice %1 {offsets = [0, 0], sizes = [4, 18], strides = [1, 1]} : vector<4x384xf32> to vector<4x18xf32>
    %21 = tpu.concatenate %19, %20 in 1 : vector<4x366xf32>, vector<4x18xf32> -> vector<4x384xf32>
    %22 = vector.extract_strided_slice %1 {offsets = [0, 19], sizes = [4, 365], strides = [1, 1]} : vector<4x384xf32> to vector<4x365xf32>
    %23 = vector.extract_strided_slice %1 {offsets = [0, 0], sizes = [4, 19], strides = [1, 1]} : vector<4x384xf32> to vector<4x19xf32>
    %24 = tpu.concatenate %22, %23 in 1 : vector<4x365xf32>, vector<4x19xf32> -> vector<4x384xf32>
    %25 = vector.extract_strided_slice %1 {offsets = [0, 20], sizes = [4, 364], strides = [1, 1]} : vector<4x384xf32> to vector<4x364xf32>
    %26 = vector.extract_strided_slice %1 {offsets = [0, 0], sizes = [4, 20], strides = [1, 1]} : vector<4x384xf32> to vector<4x20xf32>
    %27 = tpu.concatenate %25, %26 in 1 : vector<4x364xf32>, vector<4x20xf32> -> vector<4x384xf32>
    %28 = vector.extract_strided_slice %1 {offsets = [0, 36], sizes = [4, 348], strides = [1, 1]} : vector<4x384xf32> to vector<4x348xf32>
    %29 = vector.extract_strided_slice %1 {offsets = [0, 0], sizes = [4, 36], strides = [1, 1]} : vector<4x384xf32> to vector<4x36xf32>
    %30 = tpu.concatenate %28, %29 in 1 : vector<4x348xf32>, vector<4x36xf32> -> vector<4x384xf32>
    %31 = vector.extract_strided_slice %1 {offsets = [0, 37], sizes = [4, 347], strides = [1, 1]} : vector<4x384xf32> to vector<4x347xf32>
    %32 = vector.extract_strided_slice %1 {offsets = [0, 0], sizes = [4, 37], strides = [1, 1]} : vector<4x384xf32> to vector<4x37xf32>
    %33 = tpu.concatenate %31, %32 in 1 : vector<4x347xf32>, vector<4x37xf32> -> vector<4x384xf32>
    %34 = vector.extract_strided_slice %1 {offsets = [0, 38], sizes = [4, 346], strides = [1, 1]} : vector<4x384xf32> to vector<4x346xf32>
    %35 = vector.extract_strided_slice %1 {offsets = [0, 0], sizes = [4, 38], strides = [1, 1]} : vector<4x384xf32> to vector<4x38xf32>
    %36 = tpu.concatenate %34, %35 in 1 : vector<4x346xf32>, vector<4x38xf32> -> vector<4x384xf32>
    %37 = tpu.concatenate %1, %15, %18, %21, %24, %27, %30, %33, %36 in 0 : vector<4x384xf32>, vector<4x384xf32>, vector<4x384xf32>, vector<4x384xf32>, vector<4x384xf32>, vector<4x384xf32>, vector<4x384xf32>, vector<4x384xf32>, vector<4x384xf32> -> vector<36x384xf32>
    %c0_7 = arith.constant 0 : index
    %c0_8 = arith.constant 0 : index
    %38 = vector.load %arg4[%c0_7, %c0_8] : memref<4x36xf32, #tpu.memory_space<vmem>>, vector<4x36xf32>
    %cst = arith.constant dense<0.000000e+00> : vector<4x384xf32>
    %39 = tpu.matmul %38, %37, %cst {dimension_numbers = #tpu.dot_dimension_numbers<[1], [0], [0], [1], [0, 0, 1, 1], [], []>} : vector<4x36xf32>, vector<36x384xf32>, vector<4x384xf32> -> vector<4x384xf32>
    %cst_9 = arith.constant 0.000000e+00 : f32
    %40 = vector.broadcast %cst_9 : f32 to vector<4x384xf32>
    %41 = arith.select %12, %39, %40 : vector<4x384xi1>, vector<4x384xf32>
    %cst_10 = arith.constant dense<0.000000e+00> : vector<4xf32>
    %42 = vector.multi_reduction <add>, %41, %cst_10 [1] : vector<4x384xf32> to vector<4xf32>
    %43 = vector.shape_cast %42 : vector<4xf32> to vector<4x1xf32>
    %44 = arith.mulf %41, %41 : vector<4x384xf32>
    %cst_11 = arith.constant dense<0.000000e+00> : vector<4xf32>
    %45 = vector.multi_reduction <add>, %44, %cst_11 [1] : vector<4x384xf32> to vector<4xf32>
    %46 = vector.shape_cast %45 : vector<4xf32> to vector<4x1xf32>
    %cst_12 = arith.constant 3.906250e-03 : f32
    %47 = vector.broadcast %cst_12 : f32 to vector<4x1xf32>
    %48 = arith.mulf %43, %47 : vector<4x1xf32>
    %cst_13 = arith.constant 3.906250e-03 : f32
    %49 = vector.broadcast %cst_13 : f32 to vector<4x1xf32>
    %50 = arith.mulf %46, %49 : vector<4x1xf32>
    %51 = arith.mulf %48, %48 : vector<4x1xf32>
    %52 = arith.subf %50, %51 : vector<4x1xf32>
    %cst_14 = arith.constant 0.000000e+00 : f32
    %53 = vector.broadcast %cst_14 : f32 to vector<4x1xf32>
    %54 = arith.maximumf %52, %53 : vector<4x1xf32>
    %c0_15 = arith.constant 0 : index
    %c0_16 = arith.constant 0 : index
    %55 = vector.load %arg6[%c0_15, %c0_16] : memref<4x1xf32, #tpu.memory_space<vmem>>, vector<4x1xf32>
    %cst_17 = arith.constant 9.99999974E-6 : f32
    %56 = vector.broadcast %cst_17 : f32 to vector<4x1xf32>
    %57 = arith.addf %54, %56 : vector<4x1xf32>
    %58 = math.rsqrt %57 : vector<4x1xf32>
    %59 = arith.mulf %55, %58 : vector<4x1xf32>
    %c0_18 = arith.constant 0 : index
    %c0_19 = arith.constant 0 : index
    %60 = vector.load %arg7[%c0_18, %c0_19] : memref<4x1xf32, #tpu.memory_space<vmem>>, vector<4x1xf32>
    %61 = arith.mulf %48, %59 : vector<4x1xf32>
    %62 = arith.subf %60, %61 : vector<4x1xf32>
    %63 = vector.broadcast %59 : vector<4x1xf32> to vector<4x384xf32>
    %64 = arith.mulf %39, %63 : vector<4x384xf32>
    %65 = vector.broadcast %62 : vector<4x1xf32> to vector<4x384xf32>
    %66 = arith.addf %64, %65 : vector<4x384xf32>
    %cst_20 = arith.constant 0.000000e+00 : f32
    %67 = vector.broadcast %cst_20 : f32 to vector<4x384xf32>
    %68 = arith.maximumf %66, %67 : vector<4x384xf32>
    %69 = vector.extract_strided_slice %68 {offsets = [0, 365], sizes = [4, 19], strides = [1, 1]} : vector<4x384xf32> to vector<4x19xf32>
    %70 = vector.extract_strided_slice %68 {offsets = [0, 0], sizes = [4, 365], strides = [1, 1]} : vector<4x384xf32> to vector<4x365xf32>
    %71 = tpu.concatenate %69, %70 in 1 : vector<4x19xf32>, vector<4x365xf32> -> vector<4x384xf32>
    %c0_i32 = arith.constant 0 : i32
    %72 = vector.broadcast %c0_i32 : i32 to vector<4x384xi32>
    %73 = arith.cmpi eq, %4, %72 : vector<4x384xi32>
    %74 = vector.extract_strided_slice %71 {offsets = [0, 36], sizes = [4, 348], strides = [1, 1]} : vector<4x384xf32> to vector<4x348xf32>
    %75 = vector.extract_strided_slice %71 {offsets = [0, 0], sizes = [4, 36], strides = [1, 1]} : vector<4x384xf32> to vector<4x36xf32>
    %76 = tpu.concatenate %74, %75 in 1 : vector<4x348xf32>, vector<4x36xf32> -> vector<4x384xf32>
    %77 = arith.select %73, %76, %71 : vector<4x384xi1>, vector<4x384xf32>
    %c17_i32 = arith.constant 17 : i32
    %78 = vector.broadcast %c17_i32 : i32 to vector<4x384xi32>
    %79 = arith.cmpi eq, %4, %78 : vector<4x384xi32>
    %80 = vector.extract_strided_slice %71 {offsets = [0, 348], sizes = [4, 36], strides = [1, 1]} : vector<4x384xf32> to vector<4x36xf32>
    %81 = vector.extract_strided_slice %71 {offsets = [0, 0], sizes = [4, 348], strides = [1, 1]} : vector<4x384xf32> to vector<4x348xf32>
    %82 = tpu.concatenate %80, %81 in 1 : vector<4x36xf32>, vector<4x348xf32> -> vector<4x384xf32>
    %83 = arith.select %79, %82, %77 : vector<4x384xi1>, vector<4x384xf32>
    %c0_i32_21 = arith.constant 0 : i32
    %84 = vector.broadcast %c0_i32_21 : i32 to vector<4x384xi32>
    %85 = arith.cmpi eq, %7, %84 : vector<4x384xi32>
    %86 = vector.extract_strided_slice %83 {offsets = [0, 2], sizes = [4, 382], strides = [1, 1]} : vector<4x384xf32> to vector<4x382xf32>
    %87 = vector.extract_strided_slice %83 {offsets = [0, 0], sizes = [4, 2], strides = [1, 1]} : vector<4x384xf32> to vector<4x2xf32>
    %88 = tpu.concatenate %86, %87 in 1 : vector<4x382xf32>, vector<4x2xf32> -> vector<4x384xf32>
    %89 = arith.select %85, %88, %83 : vector<4x384xi1>, vector<4x384xf32>
    %c17_i32_22 = arith.constant 17 : i32
    %90 = vector.broadcast %c17_i32_22 : i32 to vector<4x384xi32>
    %91 = arith.cmpi eq, %7, %90 : vector<4x384xi32>
    %92 = vector.extract_strided_slice %89 {offsets = [0, 382], sizes = [4, 2], strides = [1, 1]} : vector<4x384xf32> to vector<4x2xf32>
    %93 = vector.extract_strided_slice %89 {offsets = [0, 0], sizes = [4, 382], strides = [1, 1]} : vector<4x384xf32> to vector<4x382xf32>
    %94 = tpu.concatenate %92, %93 in 1 : vector<4x2xf32>, vector<4x382xf32> -> vector<4x384xf32>
    %95 = arith.select %91, %94, %89 : vector<4x384xi1>, vector<4x384xf32>
    %96 = vector.extract_strided_slice %95 {offsets = [0, 1], sizes = [4, 383], strides = [1, 1]} : vector<4x384xf32> to vector<4x383xf32>
    %97 = vector.extract_strided_slice %95 {offsets = [0, 0], sizes = [4, 1], strides = [1, 1]} : vector<4x384xf32> to vector<4x1xf32>
    %98 = tpu.concatenate %96, %97 in 1 : vector<4x383xf32>, vector<4x1xf32> -> vector<4x384xf32>
    %99 = vector.extract_strided_slice %95 {offsets = [0, 2], sizes = [4, 382], strides = [1, 1]} : vector<4x384xf32> to vector<4x382xf32>
    %100 = vector.extract_strided_slice %95 {offsets = [0, 0], sizes = [4, 2], strides = [1, 1]} : vector<4x384xf32> to vector<4x2xf32>
    %101 = tpu.concatenate %99, %100 in 1 : vector<4x382xf32>, vector<4x2xf32> -> vector<4x384xf32>
    %102 = vector.extract_strided_slice %95 {offsets = [0, 18], sizes = [4, 366], strides = [1, 1]} : vector<4x384xf32> to vector<4x366xf32>
    %103 = vector.extract_strided_slice %95 {offsets = [0, 0], sizes = [4, 18], strides = [1, 1]} : vector<4x384xf32> to vector<4x18xf32>
    %104 = tpu.concatenate %102, %103 in 1 : vector<4x366xf32>, vector<4x18xf32> -> vector<4x384xf32>
    %105 = vector.extract_strided_slice %95 {offsets = [0, 19], sizes = [4, 365], strides = [1, 1]} : vector<4x384xf32> to vector<4x365xf32>
    %106 = vector.extract_strided_slice %95 {offsets = [0, 0], sizes = [4, 19], strides = [1, 1]} : vector<4x384xf32> to vector<4x19xf32>
    %107 = tpu.concatenate %105, %106 in 1 : vector<4x365xf32>, vector<4x19xf32> -> vector<4x384xf32>
    %108 = vector.extract_strided_slice %95 {offsets = [0, 20], sizes = [4, 364], strides = [1, 1]} : vector<4x384xf32> to vector<4x364xf32>
    %109 = vector.extract_strided_slice %95 {offsets = [0, 0], sizes = [4, 20], strides = [1, 1]} : vector<4x384xf32> to vector<4x20xf32>
    %110 = tpu.concatenate %108, %109 in 1 : vector<4x364xf32>, vector<4x20xf32> -> vector<4x384xf32>
    %111 = vector.extract_strided_slice %95 {offsets = [0, 36], sizes = [4, 348], strides = [1, 1]} : vector<4x384xf32> to vector<4x348xf32>
    %112 = vector.extract_strided_slice %95 {offsets = [0, 0], sizes = [4, 36], strides = [1, 1]} : vector<4x384xf32> to vector<4x36xf32>
    %113 = tpu.concatenate %111, %112 in 1 : vector<4x348xf32>, vector<4x36xf32> -> vector<4x384xf32>
    %114 = vector.extract_strided_slice %95 {offsets = [0, 37], sizes = [4, 347], strides = [1, 1]} : vector<4x384xf32> to vector<4x347xf32>
    %115 = vector.extract_strided_slice %95 {offsets = [0, 0], sizes = [4, 37], strides = [1, 1]} : vector<4x384xf32> to vector<4x37xf32>
    %116 = tpu.concatenate %114, %115 in 1 : vector<4x347xf32>, vector<4x37xf32> -> vector<4x384xf32>
    %117 = vector.extract_strided_slice %95 {offsets = [0, 38], sizes = [4, 346], strides = [1, 1]} : vector<4x384xf32> to vector<4x346xf32>
    %118 = vector.extract_strided_slice %95 {offsets = [0, 0], sizes = [4, 38], strides = [1, 1]} : vector<4x384xf32> to vector<4x38xf32>
    %119 = tpu.concatenate %117, %118 in 1 : vector<4x346xf32>, vector<4x38xf32> -> vector<4x384xf32>
    %120 = tpu.concatenate %95, %98, %101, %104, %107, %110, %113, %116, %119 in 0 : vector<4x384xf32>, vector<4x384xf32>, vector<4x384xf32>, vector<4x384xf32>, vector<4x384xf32>, vector<4x384xf32>, vector<4x384xf32>, vector<4x384xf32>, vector<4x384xf32> -> vector<36x384xf32>
    %c0_23 = arith.constant 0 : index
    %c0_24 = arith.constant 0 : index
    %121 = vector.load %arg5[%c0_23, %c0_24] : memref<4x36xf32, #tpu.memory_space<vmem>>, vector<4x36xf32>
    %cst_25 = arith.constant dense<0.000000e+00> : vector<4x384xf32>
    %122 = tpu.matmul %121, %120, %cst_25 {dimension_numbers = #tpu.dot_dimension_numbers<[1], [0], [0], [1], [0, 0, 1, 1], [], []>} : vector<4x36xf32>, vector<36x384xf32>, vector<4x384xf32> -> vector<4x384xf32>
    %cst_26 = arith.constant 0.000000e+00 : f32
    %123 = vector.broadcast %cst_26 : f32 to vector<4x384xf32>
    %124 = arith.select %12, %122, %123 : vector<4x384xi1>, vector<4x384xf32>
    %cst_27 = arith.constant dense<0.000000e+00> : vector<4xf32>
    %125 = vector.multi_reduction <add>, %124, %cst_27 [1] : vector<4x384xf32> to vector<4xf32>
    %126 = vector.shape_cast %125 : vector<4xf32> to vector<4x1xf32>
    %127 = arith.mulf %124, %124 : vector<4x384xf32>
    %cst_28 = arith.constant dense<0.000000e+00> : vector<4xf32>
    %128 = vector.multi_reduction <add>, %127, %cst_28 [1] : vector<4x384xf32> to vector<4xf32>
    %129 = vector.shape_cast %128 : vector<4xf32> to vector<4x1xf32>
    %cst_29 = arith.constant 3.906250e-03 : f32
    %130 = vector.broadcast %cst_29 : f32 to vector<4x1xf32>
    %131 = arith.mulf %126, %130 : vector<4x1xf32>
    %cst_30 = arith.constant 3.906250e-03 : f32
    %132 = vector.broadcast %cst_30 : f32 to vector<4x1xf32>
    %133 = arith.mulf %129, %132 : vector<4x1xf32>
    %134 = arith.mulf %131, %131 : vector<4x1xf32>
    %135 = arith.subf %133, %134 : vector<4x1xf32>
    %cst_31 = arith.constant 0.000000e+00 : f32
    %136 = vector.broadcast %cst_31 : f32 to vector<4x1xf32>
    %137 = arith.maximumf %135, %136 : vector<4x1xf32>
    %c0_32 = arith.constant 0 : index
    %c0_33 = arith.constant 0 : index
    %138 = vector.load %arg8[%c0_32, %c0_33] : memref<4x1xf32, #tpu.memory_space<vmem>>, vector<4x1xf32>
    %cst_34 = arith.constant 9.99999974E-6 : f32
    %139 = vector.broadcast %cst_34 : f32 to vector<4x1xf32>
    %140 = arith.addf %137, %139 : vector<4x1xf32>
    %141 = math.rsqrt %140 : vector<4x1xf32>
    %142 = arith.mulf %138, %141 : vector<4x1xf32>
    %c0_35 = arith.constant 0 : index
    %c0_36 = arith.constant 0 : index
    %143 = vector.load %arg9[%c0_35, %c0_36] : memref<4x1xf32, #tpu.memory_space<vmem>>, vector<4x1xf32>
    %144 = arith.mulf %131, %142 : vector<4x1xf32>
    %145 = arith.subf %143, %144 : vector<4x1xf32>
    %146 = vector.broadcast %142 : vector<4x1xf32> to vector<4x384xf32>
    %147 = arith.mulf %122, %146 : vector<4x384xf32>
    %148 = vector.broadcast %145 : vector<4x1xf32> to vector<4x384xf32>
    %149 = arith.addf %147, %148 : vector<4x384xf32>
    %150 = vector.extract_strided_slice %1 {offsets = [0, 19], sizes = [4, 365], strides = [1, 1]} : vector<4x384xf32> to vector<4x365xf32>
    %151 = vector.extract_strided_slice %1 {offsets = [0, 0], sizes = [4, 19], strides = [1, 1]} : vector<4x384xf32> to vector<4x19xf32>
    %152 = tpu.concatenate %150, %151 in 1 : vector<4x365xf32>, vector<4x19xf32> -> vector<4x384xf32>
    %153 = arith.addf %152, %149 : vector<4x384xf32>
    %154 = vector.extract_strided_slice %153 {offsets = [0, 0], sizes = [4, 288], strides = [1, 1]} : vector<4x384xf32> to vector<4x288xf32>
    %c0_37 = arith.constant 0 : index
    %c0_38 = arith.constant 0 : index
    %c0_39 = arith.constant 0 : index
    %155 = vector.load %arg10[%c0_37, %c0_38, %c0_39] : memref<1x4x288xf32, #tpu.memory_space<vmem>>, vector<1x4x288xf32>
    %156 = vector.shape_cast %155 : vector<1x4x288xf32> to vector<4x288xf32>
    %157 = vector.shape_cast %154 : vector<4x288xf32> to vector<1x4x288xf32>
    tpu.vector_store %arg10[%c0_37, %c0_38, %c0_39], %157 {strides = array<i32>} : memref<1x4x288xf32, #tpu.memory_space<vmem>>, vector<1x4x288xf32>,
    return
  }
  func.func @transform_0(%arg0: i32) -> (i32, i32, i32) {
    %c0_i32 = arith.constant 0 : i32
    %c0_i32_0 = arith.constant 0 : i32
    %c0_i32_1 = arith.constant 0 : i32
    return %arg0, %c0_i32, %c0_i32_0 : i32, i32, i32
  }
  func.func @transform_1(%arg0: i32) -> (i32, i32) {
    %c0_i32 = arith.constant 0 : i32
    %c0_i32_0 = arith.constant 0 : i32
    %c0_i32_1 = arith.constant 0 : i32
    return %c0_i32, %c0_i32_0 : i32, i32
  }
  func.func @transform_2(%arg0: i32) -> (i32, i32) {
    %c0_i32 = arith.constant 0 : i32
    %c0_i32_0 = arith.constant 0 : i32
    %c0_i32_1 = arith.constant 0 : i32
    return %c0_i32, %c0_i32_0 : i32, i32
  }
  func.func @transform_3(%arg0: i32) -> (i32, i32) {
    %c0_i32 = arith.constant 0 : i32
    %c0_i32_0 = arith.constant 0 : i32
    %c0_i32_1 = arith.constant 0 : i32
    return %c0_i32, %c0_i32_0 : i32, i32
  }
  func.func @transform_4(%arg0: i32) -> (i32, i32) {
    %c0_i32 = arith.constant 0 : i32
    %c0_i32_0 = arith.constant 0 : i32
    %c0_i32_1 = arith.constant 0 : i32
    return %c0_i32, %c0_i32_0 : i32, i32
  }
  func.func @transform_5(%arg0: i32) -> (i32, i32) {
    %c0_i32 = arith.constant 0 : i32
    %c0_i32_0 = arith.constant 0 : i32
    %c0_i32_1 = arith.constant 0 : i32
    return %c0_i32, %c0_i32_0 : i32, i32
  }
  func.func @transform_6(%arg0: i32) -> (i32, i32) {
    %c0_i32 = arith.constant 0 : i32
    %c0_i32_0 = arith.constant 0 : i32
    %c0_i32_1 = arith.constant 0 : i32
    return %c0_i32, %c0_i32_0 : i32, i32
  }
  func.func @transform_7(%arg0: i32) -> (i32, i32) {
    %c0_i32 = arith.constant 0 : i32
    %c0_i32_0 = arith.constant 0 : i32
    %c0_i32_1 = arith.constant 0 : i32
    return %c0_i32, %c0_i32_0 : i32, i32
  }
  func.func @transform_8(%arg0: i32) -> (i32, i32) {
    %c0_i32 = arith.constant 0 : i32
    %c0_i32_0 = arith.constant 0 : i32
    %c0_i32_1 = arith.constant 0 : i32
    return %c0_i32, %c0_i32_0 : i32, i32
  }
  func.func @transform_9(%arg0: i32) -> (i32, i32, i32) {
    %c0_i32 = arith.constant 0 : i32
    %c0_i32_0 = arith.constant 0 : i32
    %c0_i32_1 = arith.constant 0 : i32
    return %arg0, %c0_i32, %c0_i32_0 : i32, i32, i32
  }
}

</mosaic_0001>

<llo_original>
// kernel: residual_block_forward.1
$region0: #{residual_block_forward.1}
  #allocation0 [shape = 'u32[]', space=smem, size = 0x4, offset = 0x4, fixed_abs, tag = 'smem constant byte address 0x4 - core index']
  #allocation1 [shape = 'u32[144,128]{1,0:T(1,128)}', space=vmem, size = 0x12000, scoped, tag = 'internal scratch']
  %s0 = inlined_call_operand.vmem [shape: f32[2,4,384], index: 0, kind: input, shape index: {}]
  %s1 = inlined_call_operand.vmem [shape: s32[1,384], index: 1, kind: input, shape index: {}]
  %s2 = inlined_call_operand.vmem [shape: s32[1,384], index: 2, kind: input, shape index: {}]
  %s3 = inlined_call_operand.vmem [shape: f32[4,36], index: 3, kind: input, shape index: {}]
  %s4 = inlined_call_operand.vmem [shape: f32[4,36], index: 4, kind: input, shape index: {}]
  %s5 = inlined_call_operand.vmem [shape: f32[4,1], index: 5, kind: input, shape index: {}]
  %s6 = inlined_call_operand.vmem [shape: f32[4,1], index: 6, kind: input, shape index: {}]
  %s7 = inlined_call_operand.vmem [shape: f32[4,1], index: 7, kind: input, shape index: {}]
  %s8 = inlined_call_operand.vmem [shape: f32[4,1], index: 8, kind: input, shape index: {}]
  %s9 = inlined_call_operand.vmem [shape: f32[2,4,288], index: 9, kind: output, shape index: {}]
  %s10 = sld [smem:[#allocation0]]
  $region69: #{residual_block_forward.1} parent=0
    _
  %s12 = ssub.s32 1, %s10
  %s13 = scalar_select 0, %s12, %s10
  loop: start=0, step=1, limit=4
  $region2: #{residual_block_forward.1} parent=0 // loop_pre_header
    _
  $region3: #{residual_block_forward.1} parent=0 // loop_header
    %s15 = sphi 0, %s19
    %p16 = scmp.ge.s32.totalorder %s15, 4
    %s25 = sphi 0, %s27
    %s28 = sphi 0, %s25
    %s29 = sphi 0, %s28
    %s45 = sphi 0, %s29
    %s49 = sphi 0, %s49
    %s51 = sphi 0, %s49
    %s52 = sphi 0, %s51
    %s66 = sphi 0, %s52
    %s70 = sphi 0, %s70
    %s72 = sphi 0, %s70
    %s73 = sphi 0, %s72
    %s87 = sphi 0, %s73
    %s91 = sphi 0, %s91
    %s93 = sphi 0, %s91
    %s94 = sphi 0, %s93
    %s108 = sphi 0, %s94
    %s112 = sphi 0, %s112
    %s114 = sphi 0, %s112
    %s115 = sphi 0, %s114
    %s129 = sphi 0, %s115
    %s133 = sphi 0, %s133
    %s135 = sphi 0, %s133
    %s136 = sphi 0, %s135
    %s150 = sphi 0, %s136
    %s154 = sphi 0, %s154
    %s156 = sphi 0, %s154
    %s157 = sphi 0, %s156
    %s171 = sphi 0, %s157
    %s175 = sphi 0, %s175
    %s177 = sphi 0, %s175
    %s178 = sphi 0, %s177
    %s192 = sphi 0, %s178
    %s196 = sphi 0, %s196
    %s198 = sphi 0, %s196
    %s199 = sphi 0, %s198
    %s213 = sphi 0, %s199
    %s219 = sphi 0, %s221
    %s222 = sphi 0, %s219
    %s223 = sphi 0, %s222
    %s239 = sphi 0, %s223
  $region4: #{residual_block_forward.1} parent=0 // loop_header_branch
    %18 = sbr.rel (%p16) target = $region8
  $region5: #{residual_block_forward.1} parent=0 // loop_body
    %s20 = ssub.s32 %s15, 1
    %s21 = ssub.s32 %s15, 2
    %s22 = sadd.s32 %s15, 1
    %s23 = ssub.s32 %s15, %s22
    %p24 = scmp.eq.s32.totalorder %s23, 0
    %s26 = sadd.s32 %s25, 1
    %s27 = scalar_select %p24, %s25, %s26
    %p30 = pneg %p24
    %p31 = scmp.eq.s32.totalorder %s15, 1
    %p32 = por %p30, %p31
    %p33 = scmp.ne.s32.totalorder %s25, %s28
    %p34 = scmp.eq.s32.totalorder %s15, 0
    %p35 = por %p33, %p34
    %p36 = scmp.ne.s32.totalorder %s25, %s28
    %p37 = scmp.eq.s32.totalorder %s20, 1
    %p38 = por %p36, %p37
    %p39 = scmp.ne.s32.totalorder %s28, %s29
    %p40 = scmp.eq.s32.totalorder %s20, 0
    %p41 = por %p39, %p40
    %p42 = scmp.ne.s32.totalorder %s28, %s29
    %p43 = scmp.eq.s32.totalorder %s21, 1
    %p44 = por %p42, %p43
    %p46 = scmp.ne.s32.totalorder %s29, %s45
    %p47 = scmp.eq.s32.totalorder %s21, 0
    %p48 = por %p46, %p47
    %s50 = sadd.s32 %s49, 1
    %p53 = scmp.eq.s32.totalorder %s15, 1
    %p54 = scmp.ne.s32.totalorder %s49, %s51
    %p55 = scmp.eq.s32.totalorder %s15, 0
    %p56 = por %p54, %p55
    %p57 = scmp.ne.s32.totalorder %s49, %s51
    %p58 = scmp.eq.s32.totalorder %s20, 1
    %p59 = por %p57, %p58
    %p60 = scmp.ne.s32.totalorder %s51, %s52
    %p61 = scmp.eq.s32.totalorder %s20, 0
    %p62 = por %p60, %p61
    %p63 = scmp.ne.s32.totalorder %s51, %s52
    %p64 = scmp.eq.s32.totalorder %s21, 1
    %p65 = por %p63, %p64
    %p67 = scmp.ne.s32.totalorder %s52, %s66
    %p68 = scmp.eq.s32.totalorder %s21, 0
    %p69 = por %p67, %p68
    %s71 = sadd.s32 %s70, 1
    %p74 = scmp.eq.s32.totalorder %s15, 1
    %p75 = scmp.ne.s32.totalorder %s70, %s72
    %p76 = scmp.eq.s32.totalorder %s15, 0
    %p77 = por %p75, %p76
    %p78 = scmp.ne.s32.totalorder %s70, %s72
    %p79 = scmp.eq.s32.totalorder %s20, 1
    %p80 = por %p78, %p79
    %p81 = scmp.ne.s32.totalorder %s72, %s73
    %p82 = scmp.eq.s32.totalorder %s20, 0
    %p83 = por %p81, %p82
    %p84 = scmp.ne.s32.totalorder %s72, %s73
    %p85 = scmp.eq.s32.totalorder %s21, 1
    %p86 = por %p84, %p85
    %p88 = scmp.ne.s32.totalorder %s73, %s87
    %p89 = scmp.eq.s32.totalorder %s21, 0
    %p90 = por %p88, %p89
    %s92 = sadd.s32 %s91, 1
    %p95 = scmp.eq.s32.totalorder %s15, 1
    %p96 = scmp.ne.s32.totalorder %s91, %s93
    %p97 = scmp.eq.s32.totalorder %s15, 0
    %p98 = por %p96, %p97
    %p99 = scmp.ne.s32.totalorder %s91, %s93
    %p100 = scmp.eq.s32.totalorder %s20, 1
    %p101 = por %p99, %p100
    %p102 = scmp.ne.s32.totalorder %s93, %s94
    %p103 = scmp.eq.s32.totalorder %s20, 0
    %p104 = por %p102, %p103
    %p105 = scmp.ne.s32.totalorder %s93, %s94
    %p106 = scmp.eq.s32.totalorder %s21, 1
    %p107 = por %p105, %p106
    %p109 = scmp.ne.s32.totalorder %s94, %s108
    %p110 = scmp.eq.s32.totalorder %s21, 0
    %p111 = por %p109, %p110
    %s113 = sadd.s32 %s112, 1
    %p116 = scmp.eq.s32.totalorder %s15, 1
    %p117 = scmp.ne.s32.totalorder %s112, %s114
    %p118 = scmp.eq.s32.totalorder %s15, 0
    %p119 = por %p117, %p118
    %p120 = scmp.ne.s32.totalorder %s112, %s114
    %p121 = scmp.eq.s32.totalorder %s20, 1
    %p122 = por %p120, %p121
    %p123 = scmp.ne.s32.totalorder %s114, %s115
    %p124 = scmp.eq.s32.totalorder %s20, 0
    %p125 = por %p123, %p124
    %p126 = scmp.ne.s32.totalorder %s114, %s115
    %p127 = scmp.eq.s32.totalorder %s21, 1
    %p128 = por %p126, %p127
    %p130 = scmp.ne.s32.totalorder %s115, %s129
    %p131 = scmp.eq.s32.totalorder %s21, 0
    %p132 = por %p130, %p131
    %s134 = sadd.s32 %s133, 1
    %p137 = scmp.eq.s32.totalorder %s15, 1
    %p138 = scmp.ne.s32.totalorder %s133, %s135
    %p139 = scmp.eq.s32.totalorder %s15, 0
    %p140 = por %p138, %p139
    %p141 = scmp.ne.s32.totalorder %s133, %s135
    %p142 = scmp.eq.s32.totalorder %s20, 1
    %p143 = por %p141, %p142
    %p144 = scmp.ne.s32.totalorder %s135, %s136
    %p145 = scmp.eq.s32.totalorder %s20, 0
    %p146 = por %p144, %p145
    %p147 = scmp.ne.s32.totalorder %s135, %s136
    %p148 = scmp.eq.s32.totalorder %s21, 1
    %p149 = por %p147, %p148
    %p151 = scmp.ne.s32.totalorder %s136, %s150
    %p152 = scmp.eq.s32.totalorder %s21, 0
    %p153 = por %p151, %p152
    %s155 = sadd.s32 %s154, 1
    %p158 = scmp.eq.s32.totalorder %s15, 1
    %p159 = scmp.ne.s32.totalorder %s154, %s156
    %p160 = scmp.eq.s32.totalorder %s15, 0
    %p161 = por %p159, %p160
    %p162 = scmp.ne.s32.totalorder %s154, %s156
    %p163 = scmp.eq.s32.totalorder %s20, 1
    %p164 = por %p162, %p163
    %p165 = scmp.ne.s32.totalorder %s156, %s157
    %p166 = scmp.eq.s32.totalorder %s20, 0
    %p167 = por %p165, %p166
    %p168 = scmp.ne.s32.totalorder %s156, %s157
    %p169 = scmp.eq.s32.totalorder %s21, 1
    %p170 = por %p168, %p169
    %p172 = scmp.ne.s32.totalorder %s157, %s171
    %p173 = scmp.eq.s32.totalorder %s21, 0
    %p174 = por %p172, %p173
    %s176 = sadd.s32 %s175, 1
    %p179 = scmp.eq.s32.totalorder %s15, 1
    %p180 = scmp.ne.s32.totalorder %s175, %s177
    %p181 = scmp.eq.s32.totalorder %s15, 0
    %p182 = por %p180, %p181
    %p183 = scmp.ne.s32.totalorder %s175, %s177
    %p184 = scmp.eq.s32.totalorder %s20, 1
    %p185 = por %p183, %p184
    %p186 = scmp.ne.s32.totalorder %s177, %s178
    %p187 = scmp.eq.s32.totalorder %s20, 0
    %p188 = por %p186, %p187
    %p189 = scmp.ne.s32.totalorder %s177, %s178
    %p190 = scmp.eq.s32.totalorder %s21, 1
    %p191 = por %p189, %p190
    %p193 = scmp.ne.s32.totalorder %s178, %s192
    %p194 = scmp.eq.s32.totalorder %s21, 0
    %p195 = por %p193, %p194
    %s197 = sadd.s32 %s196, 1
    %p200 = scmp.eq.s32.totalorder %s15, 1
    %p201 = scmp.ne.s32.totalorder %s196, %s198
    %p202 = scmp.eq.s32.totalorder %s15, 0
    %p203 = por %p201, %p202
    %p204 = scmp.ne.s32.totalorder %s196, %s198
    %p205 = scmp.eq.s32.totalorder %s20, 1
    %p206 = por %p204, %p205
    %p207 = scmp.ne.s32.totalorder %s198, %s199
    %p208 = scmp.eq.s32.totalorder %s20, 0
    %p209 = por %p207, %p208
    %p210 = scmp.ne.s32.totalorder %s198, %s199
    %p211 = scmp.eq.s32.totalorder %s21, 1
    %p212 = por %p210, %p211
    %p214 = scmp.ne.s32.totalorder %s199, %s213
    %p215 = scmp.eq.s32.totalorder %s21, 0
    %p216 = por %p214, %p215
    %s217 = ssub.s32 %s15, %s22
    %p218 = scmp.eq.s32.totalorder %s217, 0
    %s220 = sadd.s32 %s219, 1
    %s221 = scalar_select %p218, %s219, %s220
    %p224 = pneg %p218
    %p225 = scmp.eq.s32.totalorder %s15, 1
    %p226 = por %p224, %p225
    %p227 = scmp.ne.s32.totalorder %s219, %s222
    %p228 = scmp.eq.s32.totalorder %s15, 0
    %p229 = por %p227, %p228
    %p230 = scmp.ne.s32.totalorder %s219, %s222
    %p231 = scmp.eq.s32.totalorder %s20, 1
    %p232 = por %p230, %p231
    %p233 = scmp.ne.s32.totalorder %s222, %s223
    %p234 = scmp.eq.s32.totalorder %s20, 0
    %p235 = por %p233, %p234
    %p236 = scmp.ne.s32.totalorder %s222, %s223
    %p237 = scmp.eq.s32.totalorder %s21, 1
    %p238 = por %p236, %p237
    %p240 = scmp.ne.s32.totalorder %s223, %s239
    %p241 = scmp.eq.s32.totalorder %s21, 0
    %p242 = por %p240, %p241
    %p243 = scmp.le.s32.totalorder 1, %s15
    %p244 = scmp.lt.s32.totalorder %s15, 3
    %p245 = pnand %p243, %p244
    %p246 = pneg %p245
    // Predicated region
    $region9: #{residual_block_forward.1} parent=5 // pred_check
      _
    $region10: #{residual_block_forward.1} parent=5 // pred_check_branch
      %248 = sbr.rel (%p245) target = $region12
    $region11: #{residual_block_forward.1} parent=5 // pred_region
      %s249 = ssub.s32 %s15, 1
      // Predicated region
      $region13: #{residual_block_forward.1} parent=11 // pred_check
        %p250 = pneg %p62
      $region14: #{residual_block_forward.1} parent=11 // pred_check_branch
        %252 = sbr.rel (%p250) target = $region16
      $region15: #{residual_block_forward.1} parent=11 // pred_region
        _
      $region16: #{residual_block_forward.1} parent=11 // pred_fallthru
        _
      // Predicated region
      $region17: #{residual_block_forward.1} parent=11 // pred_check
        %p253 = pneg %p83
      $region18: #{residual_block_forward.1} parent=11 // pred_check_branch
        %255 = sbr.rel (%p253) target = $region20
      $region19: #{residual_block_forward.1} parent=11 // pred_region
        _
      $region20: #{residual_block_forward.1} parent=11 // pred_fallthru
        _
      // Predicated region
      $region21: #{residual_block_forward.1} parent=11 // pred_check
        %p256 = pneg %p104
      $region22: #{residual_block_forward.1} parent=11 // pred_check_branch
        %258 = sbr.rel (%p256) target = $region24
      $region23: #{residual_block_forward.1} parent=11 // pred_region
        _
      $region24: #{residual_block_forward.1} parent=11 // pred_fallthru
        _
      // Predicated region
      $region25: #{residual_block_forward.1} parent=11 // pred_check
        %p259 = pneg %p125
      $region26: #{residual_block_forward.1} parent=11 // pred_check_branch
        %261 = sbr.rel (%p259) target = $region28
      $region27: #{residual_block_forward.1} parent=11 // pred_region
        _
      $region28: #{residual_block_forward.1} parent=11 // pred_fallthru
        _
      // Predicated region
      $region29: #{residual_block_forward.1} parent=11 // pred_check
        %p262 = pneg %p146
      $region30: #{residual_block_forward.1} parent=11 // pred_check_branch
        %264 = sbr.rel (%p262) target = $region32
      $region31: #{residual_block_forward.1} parent=11 // pred_region
        _
      $region32: #{residual_block_forward.1} parent=11 // pred_fallthru
        _
      // Predicated region
      $region33: #{residual_block_forward.1} parent=11 // pred_check
        %p265 = pneg %p167
      $region34: #{residual_block_forward.1} parent=11 // pred_check_branch
        %267 = sbr.rel (%p265) target = $region36
      $region35: #{residual_block_forward.1} parent=11 // pred_region
        _
      $region36: #{residual_block_forward.1} parent=11 // pred_fallthru
        _
      // Predicated region
      $region37: #{residual_block_forward.1} parent=11 // pred_check
        %p268 = pneg %p188
      $region38: #{residual_block_forward.1} parent=11 // pred_check_branch
        %270 = sbr.rel (%p268) target = $region40
      $region39: #{residual_block_forward.1} parent=11 // pred_region
        _
      $region40: #{residual_block_forward.1} parent=11 // pred_fallthru
        _
      // Predicated region
      $region41: #{residual_block_forward.1} parent=11 // pred_check
        %p271 = pneg %p209
      $region42: #{residual_block_forward.1} parent=11 // pred_check_branch
        %273 = sbr.rel (%p271) target = $region44
      $region43: #{residual_block_forward.1} parent=11 // pred_region
        _
      $region44: #{residual_block_forward.1} parent=11 // pred_fallthru
        _
    $region12: #{residual_block_forward.1} parent=5 // pred_fallthru
      _
    %p274 = scmp.lt.s32.totalorder %s15, 2
    // Predicated region
    $region45: #{residual_block_forward.1} parent=5 // pred_check
      %p275 = pneg %p274
    $region46: #{residual_block_forward.1} parent=5 // pred_check_branch
      %277 = sbr.rel (%p275) target = $region48
    $region47: #{residual_block_forward.1} parent=5 // pred_region
      // Predicated region
      $region49: #{residual_block_forward.1} parent=47 // pred_check
        %p278 = pneg %p35
      $region50: #{residual_block_forward.1} parent=47 // pred_check_branch
        %280 = sbr.rel (%p278) target = $region52
      $region51: #{residual_block_forward.1} parent=47 // pred_region
        %p281 = scmp.lt.s32.totalorder %s15, 1
        %s282 = scalar_select %p281, %s15, 1
        %s283 = smul.addr %s282, 3
        %s284 = smul.addr %s283, 4
        %s285 = scalar_lea.vmem %s0, %s284
      $region52: #{residual_block_forward.1} parent=47 // pred_fallthru
        _
    $region48: #{residual_block_forward.1} parent=5 // pred_fallthru
      _
    %p286 = scmp.le.s32.totalorder 1, %s15
    %p287 = scmp.lt.s32.totalorder %s15, 3
    %p288 = pnand %p286, %p287
    %p289 = pneg %p288
    // Predicated region
    $region53: #{residual_block_forward.1} parent=5 // pred_check
      _
    $region54: #{residual_block_forward.1} parent=5 // pred_check_branch
      %291 = sbr.rel (%p288) target = $region56
    $region55: #{residual_block_forward.1} parent=5 // pred_region
      %s292 = ssub.s32 %s15, 1
      %p293 = scmp.lt.s32.totalorder %s20, 1
      %s294 = scalar_select %p293, %s20, 1
      %s295 = smul.addr %s294, 3
      %s296 = smul.addr %s295, 4
      %s297 = scalar_lea.vmem %s0, %s296
      %p298 = pneg %p41
      %p299 = pneg %p38
      %p300 = pneg %p62
      %p301 = pneg %p59
      %p302 = pneg %p83
      %p303 = pneg %p80
      %p304 = pneg %p104
      %p305 = pneg %p101
      %p306 = pneg %p125
      %p307 = pneg %p122
      %p308 = pneg %p146
      %p309 = pneg %p143
      %p310 = pneg %p167
      %p311 = pneg %p164
      %p312 = pneg %p188
      %p313 = pneg %p185
      %p314 = pneg %p209
      %p315 = pneg %p206
      %p316 = pneg %p235
      %p317 = pneg %p232
      %p318 = scmp.lt.s32.totalorder %s20, 1
      %s319 = scalar_select %p318, %s20, 1
      %s320 = smul.addr %s319, 3
      %s321 = smul.addr %s320, 4
      %s322 = scalar_lea.vmem %s9, %s321
      %p323 = scmp.lt.s32.totalorder %s20, 1
      %s324 = scalar_select %p323, %s20, 1
      %s325 = smul.addr %s324, 3
      %s326 = smul.addr %s325, 4
      %s327 = scalar_lea.vmem %s0, %s326
      %p328 = scmp.lt.s32.totalorder %s20, 1
      %s329 = scalar_select %p328, %s20, 1
      %s330 = smul.addr %s329, 3
      %s331 = smul.addr %s330, 4
      %s332 = scalar_lea.vmem %s9, %s331
      %v333 = vld [vmem:[%s327] sm:$0xff]
      %v334 = vld [vmem:[%s327 + $0x8] sm:$0xf]
      %v335 = vld [vmem:[%s1] sm:$0x7]
      %v336 = vlaneseq
      %v337 = vshrl.u32 %v336, 7
      %v338 = vsub.s32 0, %v337
      %v339 = vrot.slane %v335, %v338
      %v340 = vlaneseq
      %v341 = vshrl.u32 %v340, 7
      %v342 = vsub.s32 1, %v341
      %v343 = vrot.slane %v335, %v342
      %v344 = vlaneseq
      %v345 = vshrl.u32 %v344, 7
      %v346 = vsub.s32 2, %v345
      %v347 = vrot.slane %v335, %v346
      %v348 = vld [vmem:[%s2] sm:$0x7]
      %v349 = vlaneseq
      %v350 = vshrl.u32 %v349, 7
      %v351 = vsub.s32 0, %v350
      %v352 = vrot.slane %v348, %v351
      %v353 = vlaneseq
      %v354 = vshrl.u32 %v353, 7
      %v355 = vsub.s32 1, %v354
      %v356 = vrot.slane %v348, %v355
      %v357 = vlaneseq
      %v358 = vshrl.u32 %v357, 7
      %v359 = vsub.s32 2, %v358
      %v360 = vrot.slane %v348, %v359
      %vm361 = vcmp.lt.s32.totalorder %v339, 16
      %vm362 = vcmp.lt.s32.totalorder %v343, 16
      %vm363 = vcmp.lt.s32.totalorder %v347, 16
      %vm364 = vcmp.lt.s32.totalorder %v352, 16
      %vm365 = vcmp.lt.s32.totalorder %v356, 16
      %vm366 = vcmp.lt.s32.totalorder %v360, 16
      %vm367 = vmand %vm361, %vm364
      %vm368 = vmand %vm362, %vm365
      %vm369 = vmand %vm363, %vm366
      %v372 = vcombine.high %v333, %v333
      %373 = vrot.lane.b32.xlu0 %v333, 127
      %v374 = vpop.permute.xlu0 %373
      %375 = vrot.lane.b32.xlu0 %v372, 127
      %v376 = vpop.permute.xlu0 %375
      %377 = vrot.lane.b32.xlu0 %v334, 127
      %v378 = vpop.permute.xlu0 %377
      %vm379 = vcmask 1039360
      %v380 = vsel %vm379, %v374, %v376
      %v381 = vsel %vm379, %v376, %v378
      %v384 = vsel %vm379, %v378, %v374
      %385 = vrot.lane.b32.xlu0 %v333, 126
      %v386 = vpop.permute.xlu0 %385
      %387 = vrot.lane.b32.xlu0 %v372, 126
      %v388 = vpop.permute.xlu0 %387
      %389 = vrot.lane.b32.xlu0 %v334, 126
      %v390 = vpop.permute.xlu0 %389
      %vm391 = vcmask 1031168
      %v392 = vsel %vm391, %v386, %v388
      %v393 = vsel %vm391, %v388, %v390
      %v398 = vsel %vm391, %v390, %v386
      %399 = vrot.lane.b32.xlu0 %v333, 110
      %v400 = vpop.permute.xlu0 %399
      %401 = vrot.lane.b32.xlu0 %v372, 110
      %v402 = vpop.permute.xlu0 %401
      %403 = vrot.lane.b32.xlu0 %v334, 110
      %v404 = vpop.permute.xlu0 %403
      %vm405 = vcmask 900096
      %v406 = vsel %vm405, %v400, %v402
      %v407 = vsel %vm405, %v402, %v404
      %v410 = vsel %vm405, %v404, %v400
      %411 = vrot.lane.b32.xlu0 %v333, 109
      %v412 = vpop.permute.xlu0 %411
      %413 = vrot.lane.b32.xlu0 %v372, 109
      %v414 = vpop.permute.xlu0 %413
      %415 = vrot.lane.b32.xlu0 %v334, 109
      %v416 = vpop.permute.xlu0 %415
      %vm417 = vcmask 891904
      %v418 = vsel %vm417, %v412, %v414
      %v419 = vsel %vm417, %v414, %v416
      %v424 = vsel %vm417, %v416, %v412
      %425 = vrot.lane.b32.xlu0 %v333, 108
      %v426 = vpop.permute.xlu0 %425
      %427 = vrot.lane.b32.xlu0 %v372, 108
      %v428 = vpop.permute.xlu0 %427
      %429 = vrot.lane.b32.xlu0 %v334, 108
      %v430 = vpop.permute.xlu0 %429
      %vm431 = vcmask 883712
      %v432 = vsel %vm431, %v426, %v428
      %v433 = vsel %vm431, %v428, %v430
      %v436 = vsel %vm431, %v430, %v426
      %437 = vrot.lane.b32.xlu0 %v333, 92
      %v438 = vpop.permute.xlu0 %437
      %439 = vrot.lane.b32.xlu0 %v372, 92
      %v440 = vpop.permute.xlu0 %439
      %441 = vrot.lane.b32.xlu0 %v334, 92
      %v442 = vpop.permute.xlu0 %441
      %vm443 = vcmask 752640
      %v444 = vsel %vm443, %v438, %v440
      %v445 = vsel %vm443, %v440, %v442
      %v450 = vsel %vm443, %v442, %v438
      %451 = vrot.lane.b32.xlu0 %v333, 91
      %v452 = vpop.permute.xlu0 %451
      %453 = vrot.lane.b32.xlu0 %v372, 91
      %v454 = vpop.permute.xlu0 %453
      %455 = vrot.lane.b32.xlu0 %v334, 91
      %v456 = vpop.permute.xlu0 %455
      %vm457 = vcmask 744448
      %v458 = vsel %vm457, %v452, %v454
      %v459 = vsel %vm457, %v454, %v456
      %v462 = vsel %vm457, %v456, %v452
      %463 = vrot.lane.b32.xlu0 %v333, 90
      %v464 = vpop.permute.xlu0 %463
      %465 = vrot.lane.b32.xlu0 %v372, 90
      %v466 = vpop.permute.xlu0 %465
      %467 = vrot.lane.b32.xlu0 %v334, 90
      %v468 = vpop.permute.xlu0 %467
      %vm469 = vcmask 736256
      %v470 = vsel %vm469, %v464, %v466
      %v471 = vsel %vm469, %v466, %v468
      %v474 = vsel %vm469, %v468, %v464
      %v477 = vrot.slane %v380, 4
      %v478 = vrot.slane %v381, 4
      %v479 = vrot.slane %v384, 4
      %v484 = vrot.slane %v406, 4
      %v485 = vrot.slane %v407, 4
      %v486 = vrot.slane %v410, 4
      %v491 = vrot.slane %v432, 4
      %v492 = vrot.slane %v433, 4
      %v493 = vrot.slane %v436, 4
      %v498 = vrot.slane %v458, 4
      %v499 = vrot.slane %v459, 4
      %v500 = vrot.slane %v462, 4
      %vm504 = vcmask 1043456
      %v505 = vsel %vm504, %v333, %v477
      %v506 = vsel %vm504, %v372, %v478
      %v507 = vsel %vm504, %v334, %v479
      %v508 = vsel %vm504, %v392, %v484
      %v509 = vsel %vm504, %v393, %v485
      %v510 = vsel %vm504, %v398, %v486
      %v511 = vsel %vm504, %v418, %v491
      %v512 = vsel %vm504, %v419, %v492
      %v513 = vsel %vm504, %v424, %v493
      %v514 = vsel %vm504, %v444, %v498
      %v515 = vsel %vm504, %v445, %v499
      %v516 = vsel %vm504, %v450, %v500
      %v517 = vld [vmem:[%s3] sm:$0xf]
      %vm518 = vcmask 293888
      %v520 = vsel %vm518, %v517, 0
      %v522 = vsel %vm504, %v470, 0
      %v524 = vsel %vm504, %v471, 0
      %v527 = vsel %vm504, %v474, 0
      %529 = vmatprep.subr.mxu0 %v506
      %530 = vmatpush1.msra.mxu0 %v505
      %531 = vmatprep.subr.mxu0 %v509
      %532 = vmatpush1.msra.mxu0 %v508
      %533 = vmatprep.subr.mxu0 %v512
      %534 = vmatpush1.msra.mxu0 %v511
      %535 = vmatprep.subr.mxu0 %v515
      %536 = vmatpush1.msra.mxu0 %v514
      %537 = vmatprep.subr.mxu0 %v524
      %538 = vmatpush1.msra.mxu0 %v522
      %539 = vmatprep.subr.mxu0 0.0
      %540 = vmatpush1.msra.mxu0 0.0
      %541 = vmatprep.subr.mxu0 0.0
      %542 = vmatpush1.msra.mxu0 0.0
      %543 = vmatprep.subr.mxu0 0.0
      %544 = vmatpush1.msra.mxu0 0.0
      %545 = vmatprep.subr.mxu0 0.0
      %546 = vmatpush1.msra.mxu0 0.0
      %547 = vmatprep.subr.mxu0 0.0
      %548 = vmatpush1.msra.mxu0 0.0
      %549 = vmatprep.subr.mxu0 0.0
      %550 = vmatpush1.msra.mxu0 0.0
      %551 = vmatprep.subr.mxu0 0.0
      %552 = vmatpush1.msra.mxu0 0.0
      %553 = vmatprep.subr.mxu0 0.0
      %554 = vmatpush1.msra.mxu0 0.0
      %555 = vmatprep.subr.mxu0 0.0
      %556 = vmatpush1.msra.mxu0 0.0
      %557 = vmatprep.subr.mxu0 0.0
      %558 = vmatpush1.msra.mxu0 0.0
      %559 = vmatprep.subr.mxu0 0.0
      %560 = vmatpush1.msra.mxu0 0.0
      %561 = vmatprep.subr.mxu0 0.0
      %562 = vmatpush1.msra.mxu0 0.0
      %563 = vmatprep.subr.mxu0 0.0
      %564 = vmatpush1.msra.mxu0 0.0
      %565 = vmatprep.subr.mxu0 0.0
      %566 = vmatpush1.msra.mxu0 0.0
      %567 = vmatprep.subr.mxu0 0.0
      %568 = vmatpush1.msra.mxu0 0.0
      %569 = vmatprep.subr.mxu0 0.0
      %570 = vmatpush1.msra.mxu0 0.0
      %571 = vmatprep.subr.mxu0 0.0
      %572 = vmatpush1.msra.mxu0 0.0
      %573 = vmatprep.subr.mxu0 0.0
      %574 = vmatpush1.msra.mxu0 0.0
      %575 = vmatprep.subr.mxu0 0.0
      %576 = vmatpush1.msra.mxu0 0.0
      %577 = vmatprep.subr.mxu0 0.0
      %578 = vmatpush1.msra.mxu0 0.0
      %579 = vmatprep.subr.mxu0 0.0
      %580 = vmatpush1.msra.mxu0 0.0
      %581 = vmatprep.subr.mxu0 0.0
      %582 = vmatpush1.msra.mxu0 0.0
      %583 = vmatprep.subr.mxu0 0.0
      %584 = vmatpush1.msra.mxu0 0.0
      %585 = vmatprep.subr.mxu0 0.0
      %586 = vmatpush1.msra.mxu0 0.0
      %587 = vmatprep.subr.mxu0 0.0
      %588 = vmatpush1.msra.mxu0 0.0
      %589 = vmatprep.subr.mxu0 0.0
      %590 = vmatpush1.msra.mxu0 0.0
      %591 = vmatprep.subr.mxu0 0.0
      %592 = vmatpush1.msra.mxu0 0.0
      %593 = vmatprep.mubr.f32.mxu0 0.0
      %594 = vmatmul.mubr.f32.gmra.mrb[0].mxu0 %v520
      %v595 = vpop.f32.mrb[0].mxu0
      %v596 = vadd.f32 0.0, %v595
      %v597 = vpop.f32.mrb[0].mxu0
      %v598 = vadd.f32 0.0, %v597
      %599 = vdwg.mxu0
      %600 = vmatprep.subr.mxu0 0.0
      %601 = vmatpush1.msra.mxu0 %v507
      %602 = vmatprep.subr.mxu0 0.0
      %603 = vmatpush1.msra.mxu0 %v510
      %604 = vmatprep.subr.mxu0 0.0
      %605 = vmatpush1.msra.mxu0 %v513
      %606 = vmatprep.subr.mxu0 0.0
      %607 = vmatpush1.msra.mxu0 %v516
      %608 = vmatprep.subr.mxu0 0.0
      %609 = vmatpush1.msra.mxu0 %v527
      %610 = vmatprep.subr.mxu0 0.0
      %611 = vmatpush1.msra.mxu0 0.0
      %612 = vmatprep.subr.mxu0 0.0
      %613 = vmatpush1.msra.mxu0 0.0
      %614 = vmatprep.subr.mxu0 0.0
      %615 = vmatpush1.msra.mxu0 0.0
      %616 = vmatprep.subr.mxu0 0.0
      %617 = vmatpush1.msra.mxu0 0.0
      %618 = vmatprep.subr.mxu0 0.0
      %619 = vmatpush1.msra.mxu0 0.0
      %620 = vmatprep.subr.mxu0 0.0
      %621 = vmatpush1.msra.mxu0 0.0
      %622 = vmatprep.subr.mxu0 0.0
      %623 = vmatpush1.msra.mxu0 0.0
      %624 = vmatprep.subr.mxu0 0.0
      %625 = vmatpush1.msra.mxu0 0.0
      %626 = vmatprep.subr.mxu0 0.0
      %627 = vmatpush1.msra.mxu0 0.0
      %628 = vmatprep.subr.mxu0 0.0
      %629 = vmatpush1.msra.mxu0 0.0
      %630 = vmatprep.subr.mxu0 0.0
      %631 = vmatpush1.msra.mxu0 0.0
      %632 = vmatprep.subr.mxu0 0.0
      %633 = vmatpush1.msra.mxu0 0.0
      %634 = vmatprep.subr.mxu0 0.0
      %635 = vmatpush1.msra.mxu0 0.0
      %636 = vmatprep.subr.mxu0 0.0
      %637 = vmatpush1.msra.mxu0 0.0
      %638 = vmatprep.subr.mxu0 0.0
      %639 = vmatpush1.msra.mxu0 0.0
      %640 = vmatprep.subr.mxu0 0.0
      %641 = vmatpush1.msra.mxu0 0.0
      %642 = vmatprep.subr.mxu0 0.0
      %643 = vmatpush1.msra.mxu0 0.0
      %644 = vmatprep.subr.mxu0 0.0
      %645 = vmatpush1.msra.mxu0 0.0
      %646 = vmatprep.subr.mxu0 0.0
      %647 = vmatpush1.msra.mxu0 0.0
      %648 = vmatprep.subr.mxu0 0.0
      %649 = vmatpush1.msra.mxu0 0.0
      %650 = vmatprep.subr.mxu0 0.0
      %651 = vmatpush1.msra.mxu0 0.0
      %652 = vmatprep.subr.mxu0 0.0
      %653 = vmatpush1.msra.mxu0 0.0
      %654 = vmatprep.subr.mxu0 0.0
      %655 = vmatpush1.msra.mxu0 0.0
      %656 = vmatprep.subr.mxu0 0.0
      %657 = vmatpush1.msra.mxu0 0.0
      %658 = vmatprep.subr.mxu0 0.0
      %659 = vmatpush1.msra.mxu0 0.0
      %660 = vmatprep.subr.mxu0 0.0
      %661 = vmatpush1.msra.mxu0 0.0
      %662 = vmatprep.subr.mxu0 0.0
      %663 = vmatpush1.msra.mxu0 0.0
      %664 = vmatprep.mubr.f32.mxu0 0.0
      %665 = vmatmul.mubr.f32.gmra.mrb[0].mxu0 %v520
      %v666 = vpop.f32.mrb[0].mxu0
      %v667 = vadd.f32 0.0, %v666
      %v668 = vpop.f32.mrb[0].mxu0
      %669 = vdwg.mxu0
      %v670 = vsel %vm367, %v596, 0.0
      %v671 = vsel %vm368, %v598, 0.0
      %v672 = vsel %vm369, %v667, 0.0
      %v673 = vsel %vm504, %v670, 0.0
      %v674 = vsel %vm504, %v671, 0.0
      %v675 = vadd.f32 %v673, %v674
      %v676 = vsel %vm504, %v672, 0.0
      %v677 = vadd.f32 %v675, %v676
      %678 = vadd.xlane.f32.xlu0 %v677
      %v679 = vpop.xlane.xlu0 %678
      %v680 = vmul.f32 %v670, %v670
      %v681 = vmul.f32 %v671, %v671
      %v682 = vmul.f32 %v672, %v672
      %v683 = vsel %vm504, %v680, 0.0
      %v684 = vsel %vm504, %v681, 0.0
      %v685 = vadd.f32 %v683, %v684
      %v686 = vsel %vm504, %v682, 0.0
      %v687 = vadd.f32 %v685, %v686
      %688 = vadd.xlane.f32.xlu0 %v687
      %v689 = vpop.xlane.xlu0 %688
      %v690 = vmul.f32 %v679, 0.00390625
      %v691 = vmul.f32 %v689, 0.00390625
      %v692 = vmul.f32 %v690, %v690
      %v693 = vsub.f32 %v691, %v692
      %v694 = vmax.f32 %v693, 0.0
      %v695 = vld [vmem:[%s5] sm:$0xf]
      %v696 = vadd.f32 %v694, 1e-05
      %v697 = vrsqrt.pop %v696
      %v698 = vmul.f32 %v695, %v697
      %v699 = vld [vmem:[%s6] sm:$0xf]
      %v700 = vmul.f32 %v690, %v698
      %v701 = vsub.f32 %v699, %v700
      %703 = vset.pattern.permute.xlu0 0
      %704 = vperm.xlu0 %703, %v698
      %v705 = vpop.permute.xlu0 %704
      %v707 = vmul.f32 %v596, %v705
      %v708 = vmul.f32 %v598, %v705
      %v709 = vmul.f32 %v667, %v705
      %711 = vset.pattern.permute.xlu0 0
      %712 = vperm.xlu0 %711, %v701
      %v713 = vpop.permute.xlu0 %712
      %v715 = vadd.f32 %v707, %v713
      %v716 = vadd.f32 %v708, %v713
      %v717 = vadd.f32 %v709, %v713
      %v718 = vmax.f32 %v715, 0.0
      %v719 = vmax.f32 %v716, 0.0
      %v720 = vmax.f32 %v717, 0.0
      %722 = vrot.lane.b32.xlu0 %v720, 19
      %v723 = vpop.permute.xlu0 %722
      %727 = vrot.lane.b32.xlu0 %v718, 19
      %v728 = vpop.permute.xlu0 %727
      %729 = vrot.lane.b32.xlu0 %v719, 19
      %v730 = vpop.permute.xlu0 %729
      %vm731 = vcmask 154624
      %v732 = vsel %vm731, %v728, %v730
      %v733 = vsel %vm731, %v730, %v723
      %v737 = vsel %vm731, %v723, %v728
      %vm738 = vcmp.eq.s32.totalorder %v339, 0
      %vm739 = vcmp.eq.s32.totalorder %v343, 0
      %vm740 = vcmp.eq.s32.totalorder %v347, 0
      %742 = vrot.lane.b32.xlu0 %v737, 92
      %v743 = vpop.permute.xlu0 %742
      %744 = vrot.lane.b32.xlu0 %v732, 92
      %v745 = vpop.permute.xlu0 %744
      %746 = vrot.lane.b32.xlu0 %v733, 92
      %v747 = vpop.permute.xlu0 %746
      %v748 = vsel %vm443, %v743, %v745
      %v749 = vsel %vm443, %v745, %v747
      %v754 = vsel %vm443, %v747, %v743
      %v755 = vsel %vm738, %v748, %v737
      %v756 = vsel %vm739, %v749, %v732
      %v757 = vsel %vm740, %v754, %v733
      %vm758 = vcmp.eq.s32.totalorder %v339, 17
      %vm759 = vcmp.eq.s32.totalorder %v343, 17
      %vm760 = vcmp.eq.s32.totalorder %v347, 17
      %761 = vrot.lane.b32.xlu0 %v733, 36
      %v762 = vpop.permute.xlu0 %761
      %764 = vrot.lane.b32.xlu0 %v737, 36
      %v765 = vpop.permute.xlu0 %764
      %766 = vrot.lane.b32.xlu0 %v732, 36
      %v767 = vpop.permute.xlu0 %766
      %v768 = vsel %vm518, %v765, %v767
      %v769 = vsel %vm518, %v767, %v762
      %v773 = vsel %vm518, %v762, %v765
      %v774 = vsel %vm758, %v773, %v755
      %v775 = vsel %vm759, %v768, %v756
      %v776 = vsel %vm760, %v769, %v757
      %vm777 = vcmp.eq.s32.totalorder %v352, 0
      %vm778 = vcmp.eq.s32.totalorder %v356, 0
      %vm779 = vcmp.eq.s32.totalorder %v360, 0
      %783 = vrot.lane.b32.xlu0 %v774, 126
      %v784 = vpop.permute.xlu0 %783
      %785 = vrot.lane.b32.xlu0 %v775, 126
      %v786 = vpop.permute.xlu0 %785
      %787 = vrot.lane.b32.xlu0 %v776, 126
      %v788 = vpop.permute.xlu0 %787
      %v789 = vsel %vm391, %v784, %v786
      %v790 = vsel %vm391, %v786, %v788
      %v795 = vsel %vm391, %v788, %v784
      %v796 = vsel %vm777, %v789, %v774
      %v797 = vsel %vm778, %v790, %v775
      %v798 = vsel %vm779, %v795, %v776
      %vm799 = vcmp.eq.s32.totalorder %v352, 17
      %vm800 = vcmp.eq.s32.totalorder %v356, 17
      %vm801 = vcmp.eq.s32.totalorder %v360, 17
      %803 = vrot.lane.b32.xlu0 %v798, 2
      %v804 = vpop.permute.xlu0 %803
      %808 = vrot.lane.b32.xlu0 %v796, 2
      %v809 = vpop.permute.xlu0 %808
      %810 = vrot.lane.b32.xlu0 %v797, 2
      %v811 = vpop.permute.xlu0 %810
      %vm812 = vcmask 15360
      %v813 = vsel %vm812, %v809, %v811
      %v814 = vsel %vm812, %v811, %v804
      %v818 = vsel %vm812, %v804, %v809
      %v819 = vsel %vm799, %v818, %v796
      %v820 = vsel %vm800, %v813, %v797
      %v821 = vsel %vm801, %v814, %v798
      %825 = vrot.lane.b32.xlu0 %v819, 127
      %v826 = vpop.permute.xlu0 %825
      %827 = vrot.lane.b32.xlu0 %v820, 127
      %v828 = vpop.permute.xlu0 %827
      %829 = vrot.lane.b32.xlu0 %v821, 127
      %v830 = vpop.permute.xlu0 %829
      %v831 = vsel %vm379, %v826, %v828
      %v832 = vsel %vm379, %v828, %v830
      %v835 = vsel %vm379, %v830, %v826
      %836 = vrot.lane.b32.xlu0 %v819, 126
      %v837 = vpop.permute.xlu0 %836
      %838 = vrot.lane.b32.xlu0 %v820, 126
      %v839 = vpop.permute.xlu0 %838
      %840 = vrot.lane.b32.xlu0 %v821, 126
      %v841 = vpop.permute.xlu0 %840
      %v842 = vsel %vm391, %v837, %v839
      %v843 = vsel %vm391, %v839, %v841
      %v848 = vsel %vm391, %v841, %v837
      %849 = vrot.lane.b32.xlu0 %v819, 110
      %v850 = vpop.permute.xlu0 %849
      %851 = vrot.lane.b32.xlu0 %v820, 110
      %v852 = vpop.permute.xlu0 %851
      %853 = vrot.lane.b32.xlu0 %v821, 110
      %v854 = vpop.permute.xlu0 %853
      %v855 = vsel %vm405, %v850, %v852
      %v856 = vsel %vm405, %v852, %v854
      %v859 = vsel %vm405, %v854, %v850
      %860 = vrot.lane.b32.xlu0 %v819, 109
      %v861 = vpop.permute.xlu0 %860
      %862 = vrot.lane.b32.xlu0 %v820, 109
      %v863 = vpop.permute.xlu0 %862
      %864 = vrot.lane.b32.xlu0 %v821, 109
      %v865 = vpop.permute.xlu0 %864
      %v866 = vsel %vm417, %v861, %v863
      %v867 = vsel %vm417, %v863, %v865
      %v872 = vsel %vm417, %v865, %v861
      %873 = vrot.lane.b32.xlu0 %v819, 108
      %v874 = vpop.permute.xlu0 %873
      %875 = vrot.lane.b32.xlu0 %v820, 108
      %v876 = vpop.permute.xlu0 %875
      %877 = vrot.lane.b32.xlu0 %v821, 108
      %v878 = vpop.permute.xlu0 %877
      %v879 = vsel %vm431, %v874, %v876
      %v880 = vsel %vm431, %v876, %v878
      %v883 = vsel %vm431, %v878, %v874
      %884 = vrot.lane.b32.xlu0 %v819, 92
      %v885 = vpop.permute.xlu0 %884
      %886 = vrot.lane.b32.xlu0 %v820, 92
      %v887 = vpop.permute.xlu0 %886
      %888 = vrot.lane.b32.xlu0 %v821, 92
      %v889 = vpop.permute.xlu0 %888
      %v890 = vsel %vm443, %v885, %v887
      %v891 = vsel %vm443, %v887, %v889
      %v896 = vsel %vm443, %v889, %v885
      %897 = vrot.lane.b32.xlu0 %v819, 91
      %v898 = vpop.permute.xlu0 %897
      %899 = vrot.lane.b32.xlu0 %v820, 91
      %v900 = vpop.permute.xlu0 %899
      %901 = vrot.lane.b32.xlu0 %v821, 91
      %v902 = vpop.permute.xlu0 %901
      %v903 = vsel %vm457, %v898, %v900
      %v904 = vsel %vm457, %v900, %v902
      %v907 = vsel %vm457, %v902, %v898
      %908 = vrot.lane.b32.xlu0 %v819, 90
      %v909 = vpop.permute.xlu0 %908
      %910 = vrot.lane.b32.xlu0 %v820, 90
      %v911 = vpop.permute.xlu0 %910
      %912 = vrot.lane.b32.xlu0 %v821, 90
      %v913 = vpop.permute.xlu0 %912
      %v914 = vsel %vm469, %v909, %v911
      %v915 = vsel %vm469, %v911, %v913
      %v918 = vsel %vm469, %v913, %v909
      %v920 = vrot.slane %v831, 4
      %v921 = vrot.slane %v832, 4
      %v922 = vrot.slane %v835, 4
      %v927 = vrot.slane %v855, 4
      %v928 = vrot.slane %v856, 4
      %v929 = vrot.slane %v859, 4
      %v934 = vrot.slane %v879, 4
      %v935 = vrot.slane %v880, 4
      %v936 = vrot.slane %v883, 4
      %v941 = vrot.slane %v903, 4
      %v942 = vrot.slane %v904, 4
      %v943 = vrot.slane %v907, 4
      %v947 = vsel %vm504, %v819, %v920
      %v948 = vsel %vm504, %v820, %v921
      %v949 = vsel %vm504, %v821, %v922
      %v950 = vsel %vm504, %v842, %v927
      %v951 = vsel %vm504, %v843, %v928
      %v952 = vsel %vm504, %v848, %v929
      %v953 = vsel %vm504, %v866, %v934
      %v954 = vsel %vm504, %v867, %v935
      %v955 = vsel %vm504, %v872, %v936
      %v956 = vsel %vm504, %v890, %v941
      %v957 = vsel %vm504, %v891, %v942
      %v958 = vsel %vm504, %v896, %v943
      %v959 = vld [vmem:[%s4] sm:$0xf]
      %v961 = vsel %vm518, %v959, 0
      %v963 = vsel %vm504, %v914, 0
      %v965 = vsel %vm504, %v915, 0
      %v968 = vsel %vm504, %v918, 0
      %970 = vmatprep.subr.mxu0 %v948
      %971 = vmatpush1.msra.mxu0 %v947
      %972 = vmatprep.subr.mxu0 %v951
      %973 = vmatpush1.msra.mxu0 %v950
      %974 = vmatprep.subr.mxu0 %v954
      %975 = vmatpush1.msra.mxu0 %v953
      %976 = vmatprep.subr.mxu0 %v957
      %977 = vmatpush1.msra.mxu0 %v956
      %978 = vmatprep.subr.mxu0 %v965
      %979 = vmatpush1.msra.mxu0 %v963
      %980 = vmatprep.subr.mxu0 0.0
      %981 = vmatpush1.msra.mxu0 0.0
      %982 = vmatprep.subr.mxu0 0.0
      %983 = vmatpush1.msra.mxu0 0.0
      %984 = vmatprep.subr.mxu0 0.0
      %985 = vmatpush1.msra.mxu0 0.0
      %986 = vmatprep.subr.mxu0 0.0
      %987 = vmatpush1.msra.mxu0 0.0
      %988 = vmatprep.subr.mxu0 0.0
      %989 = vmatpush1.msra.mxu0 0.0
      %990 = vmatprep.subr.mxu0 0.0
      %991 = vmatpush1.msra.mxu0 0.0
      %992 = vmatprep.subr.mxu0 0.0
      %993 = vmatpush1.msra.mxu0 0.0
      %994 = vmatprep.subr.mxu0 0.0
      %995 = vmatpush1.msra.mxu0 0.0
      %996 = vmatprep.subr.mxu0 0.0
      %997 = vmatpush1.msra.mxu0 0.0
      %998 = vmatprep.subr.mxu0 0.0
      %999 = vmatpush1.msra.mxu0 0.0
      %1000 = vmatprep.subr.mxu0 0.0
      %1001 = vmatpush1.msra.mxu0 0.0
      %1002 = vmatprep.subr.mxu0 0.0
      %1003 = vmatpush1.msra.mxu0 0.0
      %1004 = vmatprep.subr.mxu0 0.0
      %1005 = vmatpush1.msra.mxu0 0.0
      %1006 = vmatprep.subr.mxu0 0.0
      %1007 = vmatpush1.msra.mxu0 0.0
      %1008 = vmatprep.subr.mxu0 0.0
      %1009 = vmatpush1.msra.mxu0 0.0
      %1010 = vmatprep.subr.mxu0 0.0
      %1011 = vmatpush1.msra.mxu0 0.0
      %1012 = vmatprep.subr.mxu0 0.0
      %1013 = vmatpush1.msra.mxu0 0.0
      %1014 = vmatprep.subr.mxu0 0.0
      %1015 = vmatpush1.msra.mxu0 0.0
      %1016 = vmatprep.subr.mxu0 0.0
      %1017 = vmatpush1.msra.mxu0 0.0
      %1018 = vmatprep.subr.mxu0 0.0
      %1019 = vmatpush1.msra.mxu0 0.0
      %1020 = vmatprep.subr.mxu0 0.0
      %1021 = vmatpush1.msra.mxu0 0.0
      %1022 = vmatprep.subr.mxu0 0.0
      %1023 = vmatpush1.msra.mxu0 0.0
      %1024 = vmatprep.subr.mxu0 0.0
      %1025 = vmatpush1.msra.mxu0 0.0
      %1026 = vmatprep.subr.mxu0 0.0
      %1027 = vmatpush1.msra.mxu0 0.0
      %1028 = vmatprep.subr.mxu0 0.0
      %1029 = vmatpush1.msra.mxu0 0.0
      %1030 = vmatprep.subr.mxu0 0.0
      %1031 = vmatpush1.msra.mxu0 0.0
      %1032 = vmatprep.subr.mxu0 0.0
      %1033 = vmatpush1.msra.mxu0 0.0
      %1034 = vmatprep.mubr.f32.mxu0 0.0
      %1035 = vmatmul.mubr.f32.gmra.mrb[0].mxu0 %v961
      %v1036 = vpop.f32.mrb[0].mxu0
      %v1037 = vadd.f32 0.0, %v1036
      %v1038 = vpop.f32.mrb[0].mxu0
      %v1039 = vadd.f32 0.0, %v1038
      %1040 = vdwg.mxu0
      %1041 = vmatprep.subr.mxu0 0.0
      %1042 = vmatpush1.msra.mxu0 %v949
      %1043 = vmatprep.subr.mxu0 0.0
      %1044 = vmatpush1.msra.mxu0 %v952
      %1045 = vmatprep.subr.mxu0 0.0
      %1046 = vmatpush1.msra.mxu0 %v955
      %1047 = vmatprep.subr.mxu0 0.0
      %1048 = vmatpush1.msra.mxu0 %v958
      %1049 = vmatprep.subr.mxu0 0.0
      %1050 = vmatpush1.msra.mxu0 %v968
      %1051 = vmatprep.subr.mxu0 0.0
      %1052 = vmatpush1.msra.mxu0 0.0
      %1053 = vmatprep.subr.mxu0 0.0
      %1054 = vmatpush1.msra.mxu0 0.0
      %1055 = vmatprep.subr.mxu0 0.0
      %1056 = vmatpush1.msra.mxu0 0.0
      %1057 = vmatprep.subr.mxu0 0.0
      %1058 = vmatpush1.msra.mxu0 0.0
      %1059 = vmatprep.subr.mxu0 0.0
      %1060 = vmatpush1.msra.mxu0 0.0
      %1061 = vmatprep.subr.mxu0 0.0
      %1062 = vmatpush1.msra.mxu0 0.0
      %1063 = vmatprep.subr.mxu0 0.0
      %1064 = vmatpush1.msra.mxu0 0.0
      %1065 = vmatprep.subr.mxu0 0.0
      %1066 = vmatpush1.msra.mxu0 0.0
      %1067 = vmatprep.subr.mxu0 0.0
      %1068 = vmatpush1.msra.mxu0 0.0
      %1069 = vmatprep.subr.mxu0 0.0
      %1070 = vmatpush1.msra.mxu0 0.0
      %1071 = vmatprep.subr.mxu0 0.0
      %1072 = vmatpush1.msra.mxu0 0.0
      %1073 = vmatprep.subr.mxu0 0.0
      %1074 = vmatpush1.msra.mxu0 0.0
      %1075 = vmatprep.subr.mxu0 0.0
      %1076 = vmatpush1.msra.mxu0 0.0
      %1077 = vmatprep.subr.mxu0 0.0
      %1078 = vmatpush1.msra.mxu0 0.0
      %1079 = vmatprep.subr.mxu0 0.0
      %1080 = vmatpush1.msra.mxu0 0.0
      %1081 = vmatprep.subr.mxu0 0.0
      %1082 = vmatpush1.msra.mxu0 0.0
      %1083 = vmatprep.subr.mxu0 0.0
      %1084 = vmatpush1.msra.mxu0 0.0
      %1085 = vmatprep.subr.mxu0 0.0
      %1086 = vmatpush1.msra.mxu0 0.0
      %1087 = vmatprep.subr.mxu0 0.0
      %1088 = vmatpush1.msra.mxu0 0.0
      %1089 = vmatprep.subr.mxu0 0.0
      %1090 = vmatpush1.msra.mxu0 0.0
      %1091 = vmatprep.subr.mxu0 0.0
      %1092 = vmatpush1.msra.mxu0 0.0
      %1093 = vmatprep.subr.mxu0 0.0
      %1094 = vmatpush1.msra.mxu0 0.0
      %1095 = vmatprep.subr.mxu0 0.0
      %1096 = vmatpush1.msra.mxu0 0.0
      %1097 = vmatprep.subr.mxu0 0.0
      %1098 = vmatpush1.msra.mxu0 0.0
      %1099 = vmatprep.subr.mxu0 0.0
      %1100 = vmatpush1.msra.mxu0 0.0
      %1101 = vmatprep.subr.mxu0 0.0
      %1102 = vmatpush1.msra.mxu0 0.0
      %1103 = vmatprep.subr.mxu0 0.0
      %1104 = vmatpush1.msra.mxu0 0.0
      %1105 = vmatprep.mubr.f32.mxu0 0.0
      %1106 = vmatmul.mubr.f32.gmra.mrb[0].mxu0 %v961
      %v1107 = vpop.f32.mrb[0].mxu0
      %v1108 = vadd.f32 0.0, %v1107
      %v1109 = vpop.f32.mrb[0].mxu0
      %1110 = vdwg.mxu0
      %v1111 = vsel %vm367, %v1037, 0.0
      %v1112 = vsel %vm368, %v1039, 0.0
      %v1113 = vsel %vm369, %v1108, 0.0
      %v1114 = vsel %vm504, %v1111, 0.0
      %v1115 = vsel %vm504, %v1112, 0.0
      %v1116 = vadd.f32 %v1114, %v1115
      %v1117 = vsel %vm504, %v1113, 0.0
      %v1118 = vadd.f32 %v1116, %v1117
      %1119 = vadd.xlane.f32.xlu0 %v1118
      %v1120 = vpop.xlane.xlu0 %1119
      %v1121 = vmul.f32 %v1111, %v1111
      %v1122 = vmul.f32 %v1112, %v1112
      %v1123 = vmul.f32 %v1113, %v1113
      %v1124 = vsel %vm504, %v1121, 0.0
      %v1125 = vsel %vm504, %v1122, 0.0
      %v1126 = vadd.f32 %v1124, %v1125
      %v1127 = vsel %vm504, %v1123, 0.0
      %v1128 = vadd.f32 %v1126, %v1127
      %1129 = vadd.xlane.f32.xlu0 %v1128
      %v1130 = vpop.xlane.xlu0 %1129
      %v1131 = vmul.f32 %v1120, 0.00390625
      %v1132 = vmul.f32 %v1130, 0.00390625
      %v1133 = vmul.f32 %v1131, %v1131
      %v1134 = vsub.f32 %v1132, %v1133
      %v1135 = vmax.f32 %v1134, 0.0
      %v1136 = vld [vmem:[%s7] sm:$0xf]
      %v1137 = vadd.f32 %v1135, 1e-05
      %v1138 = vrsqrt.pop %v1137
      %v1139 = vmul.f32 %v1136, %v1138
      %v1140 = vld [vmem:[%s8] sm:$0xf]
      %v1141 = vmul.f32 %v1131, %v1139
      %v1142 = vsub.f32 %v1140, %v1141
      %1144 = vset.pattern.permute.xlu0 0
      %1145 = vperm.xlu0 %1144, %v1139
      %v1146 = vpop.permute.xlu0 %1145
      %v1148 = vmul.f32 %v1037, %v1146
      %v1149 = vmul.f32 %v1039, %v1146
      %v1150 = vmul.f32 %v1108, %v1146
      %1152 = vset.pattern.permute.xlu0 0
      %1153 = vperm.xlu0 %1152, %v1142
      %v1154 = vpop.permute.xlu0 %1153
      %v1156 = vadd.f32 %v1148, %v1154
      %v1157 = vadd.f32 %v1149, %v1154
      %v1158 = vadd.f32 %v1150, %v1154
      %v1159 = vadd.f32 %v418, %v1156
      %v1160 = vadd.f32 %v419, %v1157
      %v1161 = vadd.f32 %v424, %v1158
      %v1164 = vcombine.low %v1159, %v1160
      %1166 = vst [vmem:[%s332] sm:$0xff] %v1164
      %vm1167 = vcmask 257024
      %1168 = vst.msk [vmem:[%s332 + $0x8] sm:$0xf] %vm1167, %v1161
      %p1169 = scmp.lt.s32.totalorder %s20, 1
      %s1170 = scalar_select %p1169, %s20, 1
      %s1171 = smul.addr %s1170, 3
      %s1172 = smul.addr %s1171, 4
      %s1173 = scalar_lea.vmem %s9, %s1172
      // Predicated region
      $region57: #{residual_block_forward.1} parent=55 // pred_check
        %p1174 = pneg %p232
      $region58: #{residual_block_forward.1} parent=55 // pred_check_branch
        %1176 = sbr.rel (%p1174) target = $region60
      $region59: #{residual_block_forward.1} parent=55 // pred_region
        _
      $region60: #{residual_block_forward.1} parent=55 // pred_fallthru
        _
    $region56: #{residual_block_forward.1} parent=5 // pred_fallthru
      _
    %p1177 = scmp.le.s32.totalorder 2, %s15
    // Predicated region
    $region61: #{residual_block_forward.1} parent=5 // pred_check
      %p1178 = pneg %p1177
    $region62: #{residual_block_forward.1} parent=5 // pred_check_branch
      %1180 = sbr.rel (%p1178) target = $region64
    $region63: #{residual_block_forward.1} parent=5 // pred_region
      %s1181 = ssub.s32 %s15, 2
      // Predicated region
      $region65: #{residual_block_forward.1} parent=63 // pred_check
        %p1182 = pneg %p238
      $region66: #{residual_block_forward.1} parent=63 // pred_check_branch
        %1184 = sbr.rel (%p1182) target = $region68
      $region67: #{residual_block_forward.1} parent=63 // pred_region
        %p1185 = scmp.lt.s32.totalorder %s21, 1
        %s1186 = scalar_select %p1185, %s21, 1
        %s1187 = smul.addr %s1186, 3
        %s1188 = smul.addr %s1187, 4
        %s1189 = scalar_lea.vmem %s9, %s1188
      $region68: #{residual_block_forward.1} parent=63 // pred_fallthru
        _
    $region64: #{residual_block_forward.1} parent=5 // pred_fallthru
      _
  $region6: #{residual_block_forward.1} parent=0 // loop_footer
    %s19 = sadd.s32 1, %s15
  $region7: #{residual_block_forward.1} parent=0 // loop_footer_branch
    %14 = sbr.rel target = $region3
  $region8: #{residual_block_forward.1} parent=0 // loop_exit
    _

</llo_original>
